<compile_context>
chip_gen: v6e
topology: v6e:2x2x1
jax: 0.10.0
libtpu: 0.0.40
codegen_flags: <defaults>
</compile_context>

<pallas_src>
import jax
import jax.numpy as jnp
from jax.experimental import pallas as pl
from jax.experimental.pallas import tpu as pltpu


def _round_up(n, m):
    return ((n + m - 1) // m) * m


# ----------------------------------------------------------------------------
# Single fused kernel: num_layers x LSTM over the sequence + 3-layer FCNN head.
# All refs are whole arrays resident in VMEM (total < 100 KiB at these sizes;
# if HIDDEN_SIZE is scaled up, set vmem_limit_bytes and K-tile the gate matmul
# before hitting the v7x 64 MiB VMEM cliff).
# ----------------------------------------------------------------------------
def _make_fused_kernel(num_layers, seq_len, batch_pad, hidden_size):
    S, B, H = seq_len, batch_pad, hidden_size

    def kernel(*refs):
        x_ref = refs[0]                                   # (S*B, I)
        layer_refs = refs[1:1 + 3 * num_layers]           # per layer: wih_t, whh_t, bias
        (fw1_ref, fb1_ref, fw2_ref, fb2_ref,
         fw3_ref, fb3_ref) = refs[1 + 3 * num_layers:1 + 3 * num_layers + 6]
        out_ref = refs[-1]                                 # (S*B, O)

        z = x_ref[...]                                     # current layer input, (S*B, in_dim)

        for l in range(num_layers):
            wih_t = layer_refs[3 * l][...]                 # (in_dim, 4H)
            whh_t = layer_refs[3 * l + 1][...]             # (H, 4H)
            bias = layer_refs[3 * l + 2][...]              # (1, 4H)

            # Batched input projection for ALL time steps: one MXU op per layer,
            # bias broadcast happens exactly once here (hoisted out of the loop).
            gx = jnp.dot(z, wih_t, preferred_element_type=jnp.float32) + bias  # (S*B, 4H)

            h = jnp.zeros((B, H), jnp.float32)
            c = jnp.zeros((B, H), jnp.float32)
            outs = []
            # Fully unrolled static time loop (S is small); only the recurrent
            # matmul remains per step.
            for t in range(S):
                gates = gx[t * B:(t + 1) * B, :] + jnp.dot(
                    h, whh_t, preferred_element_type=jnp.float32)
                # PyTorch gate order [i, f, g, o]
                i_g = jax.nn.sigmoid(gates[:, 0 * H:1 * H])
                f_g = jax.nn.sigmoid(gates[:, 1 * H:2 * H])
                g_g = jnp.tanh(gates[:, 2 * H:3 * H])
                o_g = jax.nn.sigmoid(gates[:, 3 * H:4 * H])
                c = f_g * c + i_g * g_g
                h = o_g * jnp.tanh(c)
                outs.append(h)
            # Time-major stacking == LSTM_output.view(S*B, H) row order.
            z = jnp.concatenate(outs, axis=0)              # (S*B, H)

        # FCNN head on all S*B rows at once (Dropout = identity at inference).
        y = jnp.dot(z, fw1_ref[...], preferred_element_type=jnp.float32) + fb1_ref[...]
        y = jnp.maximum(y, 0.0)
        y = jnp.dot(y, fw2_ref[...], preferred_element_type=jnp.float32) + fb2_ref[...]
        y = jnp.maximum(y, 0.0)
        y = jnp.dot(y, fw3_ref[...], preferred_element_type=jnp.float32) + fb3_ref[...]
        # Single output store at the end.
        out_ref[...] = y

    return kernel


# ----------------------------------------------------------------------------
# One-time parameter preparation (transpose weights, fuse LSTM biases).
# Done outside the forward so it is not re-executed on every call.
# ----------------------------------------------------------------------------
def prepare_params(lstm_params, fcnn_params):
    lstm_prepped = []
    for (w_ih, w_hh, b_ih, b_hh) in lstm_params:
        lstm_prepped.append((
            jnp.transpose(w_ih),                 # (in_dim, 4H)
            jnp.transpose(w_hh),                 # (H, 4H)
            (b_ih + b_hh).reshape(1, -1),        # (1, 4H)
        ))
    (w1, b1), (w2, b2), (w3, b3) = fcnn_params
    fcnn_prepped = (
        jnp.transpose(w1), b1.reshape(1, -1),
        jnp.transpose(w2), b2.reshape(1, -1),
        jnp.transpose(w3), b3.reshape(1, -1),
    )
    return tuple(lstm_prepped), fcnn_prepped


# ----------------------------------------------------------------------------
# Full model forward (mirrors classification_LSTM_model.forward)
# ----------------------------------------------------------------------------
def model_forward(x, lstm_prepped, fcnn_prepped):
    S, B, I = x.shape
    H = lstm_prepped[0][1].shape[0]
    O = fcnn_prepped[4].shape[1]
    num_layers = len(lstm_prepped)

    # Pad batch to a sublane multiple of 8 so per-step vregs / MXU rows are full.
    B_pad = _round_up(max(B, 8), 8)
    if B_pad != B:
        x = jnp.pad(x, ((0, 0), (0, B_pad - B), (0, 0)))
    x_flat = x.reshape(S * B_pad, I)

    flat_ins = [x_flat]
    for p in lstm_prepped:
        flat_ins.extend(p)
    flat_ins.extend(fcnn_prepped)

    vmem = pl.BlockSpec(memory_space=pltpu.MemorySpace.VMEM)
    kernel = _make_fused_kernel(num_layers, S, B_pad, H)
    y = pl.pallas_call(
        kernel,
        out_shape=jax.ShapeDtypeStruct((S * B_pad, O), jnp.float32),
        in_specs=[vmem] * len(flat_ins),
        out_specs=vmem,
    )(*flat_ins)

    y = y.reshape(S, B_pad, O)
    return y[:, :B, :]


# ----------------------------------------------------------------------------
# Pure-JAX reference for correctness check
# ----------------------------------------------------------------------------
def _ref_forward(x, lstm_params, fcnn_params):
    out = x
    for (w_ih, w_hh, b_ih, b_hh) in lstm_params:
        H = w_hh.shape[1]
        B = out.shape[1]
        b = b_ih + b_hh

        def step(carry, xt):
            h, c = carry
            gates = xt @ w_ih.T + h @ w_hh.T + b
            i = jax.nn.sigmoid(gates[:, :H])
            f = jax.nn.sigmoid(gates[:, H:2 * H])
            g = jnp.tanh(gates[:, 2 * H:3 * H])
            o = jax.nn.sigmoid(gates[:, 3 * H:])
            c = f * c + i * g
            h = o * jnp.tanh(c)
            return (h, c), h

        init = (jnp.zeros((B, H), jnp.float32), jnp.zeros((B, H), jnp.float32))
        _, out = jax.lax.scan(step, init, out)
    S, B, H = out.shape
    z = out.reshape(S * B, H)
    (w1, b1), (w2, b2), (w3, b3) = fcnn_params
    z = jnp.maximum(z @ w1.T + b1, 0.0)
    z = jnp.maximum(z @ w2.T + b2, 0.0)
    z = z @ w3.T + b3
    return z.reshape(S, B, -1)


# ----------------------------------------------------------------------------
# Deterministic parameter construction (shapes follow nn.LSTM / nn.Linear)
# ----------------------------------------------------------------------------
def make_params(key, input_size, hidden_size, output_size, num_layers):
    keys = jax.random.split(key, num_layers * 4 + 6)
    k = iter(keys)
    scale = 1.0 / jnp.sqrt(hidden_size)

    lstm_params = []
    for layer in range(num_layers):
        in_dim = input_size if layer == 0 else hidden_size
        w_ih = jax.random.uniform(next(k), (4 * hidden_size, in_dim),
                                  jnp.float32, -scale, scale)
        w_hh = jax.random.uniform(next(k), (4 * hidden_size, hidden_size),
                                  jnp.float32, -scale, scale)
        b_ih = jax.random.uniform(next(k), (4 * hidden_size,),
                                  jnp.float32, -scale, scale)
        b_hh = jax.random.uniform(next(k), (4 * hidden_size,),
                                  jnp.float32, -scale, scale)
        lstm_params.append((w_ih, w_hh, b_ih, b_hh))

    def linear(kw, kb, fan_in, fan_out):
        s = 1.0 / jnp.sqrt(fan_in)
        w = jax.random.uniform(kw, (fan_out, fan_in), jnp.float32, -s, s)
        b = jax.random.uniform(kb, (fan_out,), jnp.float32, -s, s)
        return w, b

    fcnn_params = (
        linear(next(k), next(k), hidden_size, 80),
        linear(next(k), next(k), 80, 10),
        linear(next(k), next(k), 10, output_size),
    )
    return lstm_params, fcnn_params


if __name__ == "__main__":
    SEQ, BATCH = 8, 2
    INPUT_SIZE, HIDDEN_SIZE, OUTPUT_SIZE, LSTM_LAYERS = 16, 32, 4, 2

    key = jax.random.PRNGKey(0)
    kx, kp = jax.random.split(key)
    x = jax.random.normal(kx, (SEQ, BATCH, INPUT_SIZE), jnp.float32)
    lstm_params, fcnn_params = make_params(
        kp, INPUT_SIZE, HIDDEN_SIZE, OUTPUT_SIZE, LSTM_LAYERS)

    # One-time weight prep (transposes / bias fusion) outside the forward.
    lstm_prep, fcnn_prep = prepare_params(lstm_params, fcnn_params)

    out = jax.block_until_ready(model_forward(x, lstm_prep, fcnn_prep))
    ref = jax.block_until_ready(_ref_forward(x, lstm_params, fcnn_params))

    assert out.shape == (SEQ, BATCH, OUTPUT_SIZE), out.shape
    assert jnp.allclose(out, ref, atol=1e-4, rtol=1e-4), "mismatch vs reference"

    print("KERNEL_OK")
</pallas_src>

<mosaic_0001>
module attributes {stable_mosaic.version = 11 : i64} {
  func.func @kernel(%arg0: memref<64x16xf32, #tpu.memory_space<vmem>>, %arg1: memref<16x128xf32, #tpu.memory_space<vmem>>, %arg2: memref<32x128xf32, #tpu.memory_space<vmem>>, %arg3: memref<1x128xf32, #tpu.memory_space<vmem>>, %arg4: memref<32x128xf32, #tpu.memory_space<vmem>>, %arg5: memref<32x128xf32, #tpu.memory_space<vmem>>, %arg6: memref<1x128xf32, #tpu.memory_space<vmem>>, %arg7: memref<32x80xf32, #tpu.memory_space<vmem>>, %arg8: memref<1x80xf32, #tpu.memory_space<vmem>>, %arg9: memref<80x10xf32, #tpu.memory_space<vmem>>, %arg10: memref<1x10xf32, #tpu.memory_space<vmem>>, %arg11: memref<10x4xf32, #tpu.memory_space<vmem>>, %arg12: memref<1x4xf32, #tpu.memory_space<vmem>>, %arg13: memref<64x4xf32, #tpu.memory_space<vmem>>) attributes {dimension_semantics = [], scalar_prefetch = 0 : i64, scratch_operands = 0 : i64, tpu.core_type = #tpu.core_type<tc>} {
    %c0 = arith.constant 0 : index
    %c0_0 = arith.constant 0 : index
    %0 = vector.load %arg0[%c0, %c0_0] : memref<64x16xf32, #tpu.memory_space<vmem>>, vector<64x16xf32>
    %c0_1 = arith.constant 0 : index
    %c0_2 = arith.constant 0 : index
    %1 = vector.load %arg1[%c0_1, %c0_2] : memref<16x128xf32, #tpu.memory_space<vmem>>, vector<16x128xf32>
    %c0_3 = arith.constant 0 : index
    %c0_4 = arith.constant 0 : index
    %2 = vector.load %arg2[%c0_3, %c0_4] : memref<32x128xf32, #tpu.memory_space<vmem>>, vector<32x128xf32>
    %c0_5 = arith.constant 0 : index
    %c0_6 = arith.constant 0 : index
    %3 = vector.load %arg3[%c0_5, %c0_6] : memref<1x128xf32, #tpu.memory_space<vmem>>, vector<1x128xf32>
    %cst = arith.constant dense<0.000000e+00> : vector<64x128xf32>
    %4 = tpu.matmul %0, %1, %cst {dimension_numbers = #tpu.dot_dimension_numbers<[1], [0], [0], [1], [0, 0, 1, 1], [], []>} : vector<64x16xf32>, vector<16x128xf32>, vector<64x128xf32> -> vector<64x128xf32>
    %5 = vector.broadcast %3 : vector<1x128xf32> to vector<64x128xf32>
    %6 = arith.addf %4, %5 : vector<64x128xf32>
    %cst_7 = arith.constant 0.000000e+00 : f32
    %7 = vector.broadcast %cst_7 : f32 to vector<8x32xf32>
    %cst_8 = arith.constant 0.000000e+00 : f32
    %8 = vector.broadcast %cst_8 : f32 to vector<8x32xf32>
    %9 = vector.extract_strided_slice %6 {offsets = [0, 0], sizes = [8, 128], strides = [1, 1]} : vector<64x128xf32> to vector<8x128xf32>
    %cst_9 = arith.constant dense<0.000000e+00> : vector<8x128xf32>
    %10 = tpu.matmul %7, %2, %cst_9 {dimension_numbers = #tpu.dot_dimension_numbers<[1], [0], [0], [1], [0, 0, 1, 1], [], []>} : vector<8x32xf32>, vector<32x128xf32>, vector<8x128xf32> -> vector<8x128xf32>
    %11 = arith.addf %9, %10 : vector<8x128xf32>
    %12 = vector.extract_strided_slice %11 {offsets = [0, 0], sizes = [8, 32], strides = [1, 1]} : vector<8x128xf32> to vector<8x32xf32>
    %13 = arith.negf %12 : vector<8x32xf32>
    %14 = math.exp %13 : vector<8x32xf32>
    %cst_10 = arith.constant 1.000000e+00 : f32
    %15 = vector.broadcast %cst_10 : f32 to vector<8x32xf32>
    %16 = arith.addf %15, %14 : vector<8x32xf32>
    %17 = arith.divf %15, %16 : vector<8x32xf32>
    %18 = vector.extract_strided_slice %11 {offsets = [0, 32], sizes = [8, 32], strides = [1, 1]} : vector<8x128xf32> to vector<8x32xf32>
    %19 = arith.negf %18 : vector<8x32xf32>
    %20 = math.exp %19 : vector<8x32xf32>
    %cst_11 = arith.constant 1.000000e+00 : f32
    %21 = vector.broadcast %cst_11 : f32 to vector<8x32xf32>
    %22 = arith.addf %21, %20 : vector<8x32xf32>
    %23 = arith.divf %21, %22 : vector<8x32xf32>
    %24 = vector.extract_strided_slice %11 {offsets = [0, 64], sizes = [8, 32], strides = [1, 1]} : vector<8x128xf32> to vector<8x32xf32>
    %25 = math.tanh %24 : vector<8x32xf32>
    %26 = vector.extract_strided_slice %11 {offsets = [0, 96], sizes = [8, 32], strides = [1, 1]} : vector<8x128xf32> to vector<8x32xf32>
    %27 = arith.negf %26 : vector<8x32xf32>
    %28 = math.exp %27 : vector<8x32xf32>
    %cst_12 = arith.constant 1.000000e+00 : f32
    %29 = vector.broadcast %cst_12 : f32 to vector<8x32xf32>
    %30 = arith.addf %29, %28 : vector<8x32xf32>
    %31 = arith.divf %29, %30 : vector<8x32xf32>
    %32 = arith.mulf %23, %8 : vector<8x32xf32>
    %33 = arith.mulf %17, %25 : vector<8x32xf32>
    %34 = arith.addf %32, %33 : vector<8x32xf32>
    %35 = math.tanh %34 : vector<8x32xf32>
    %36 = arith.mulf %31, %35 : vector<8x32xf32>
    %37 = vector.extract_strided_slice %6 {offsets = [8, 0], sizes = [8, 128], strides = [1, 1]} : vector<64x128xf32> to vector<8x128xf32>
    %cst_13 = arith.constant dense<0.000000e+00> : vector<8x128xf32>
    %38 = tpu.matmul %36, %2, %cst_13 {dimension_numbers = #tpu.dot_dimension_numbers<[1], [0], [0], [1], [0, 0, 1, 1], [], []>} : vector<8x32xf32>, vector<32x128xf32>, vector<8x128xf32> -> vector<8x128xf32>
    %39 = arith.addf %37, %38 : vector<8x128xf32>
    %40 = vector.extract_strided_slice %39 {offsets = [0, 0], sizes = [8, 32], strides = [1, 1]} : vector<8x128xf32> to vector<8x32xf32>
    %41 = arith.negf %40 : vector<8x32xf32>
    %42 = math.exp %41 : vector<8x32xf32>
    %cst_14 = arith.constant 1.000000e+00 : f32
    %43 = vector.broadcast %cst_14 : f32 to vector<8x32xf32>
    %44 = arith.addf %43, %42 : vector<8x32xf32>
    %45 = arith.divf %43, %44 : vector<8x32xf32>
    %46 = vector.extract_strided_slice %39 {offsets = [0, 32], sizes = [8, 32], strides = [1, 1]} : vector<8x128xf32> to vector<8x32xf32>
    %47 = arith.negf %46 : vector<8x32xf32>
    %48 = math.exp %47 : vector<8x32xf32>
    %cst_15 = arith.constant 1.000000e+00 : f32
    %49 = vector.broadcast %cst_15 : f32 to vector<8x32xf32>
    %50 = arith.addf %49, %48 : vector<8x32xf32>
    %51 = arith.divf %49, %50 : vector<8x32xf32>
    %52 = vector.extract_strided_slice %39 {offsets = [0, 64], sizes = [8, 32], strides = [1, 1]} : vector<8x128xf32> to vector<8x32xf32>
    %53 = math.tanh %52 : vector<8x32xf32>
    %54 = vector.extract_strided_slice %39 {offsets = [0, 96], sizes = [8, 32], strides = [1, 1]} : vector<8x128xf32> to vector<8x32xf32>
    %55 = arith.negf %54 : vector<8x32xf32>
    %56 = math.exp %55 : vector<8x32xf32>
    %cst_16 = arith.constant 1.000000e+00 : f32
    %57 = vector.broadcast %cst_16 : f32 to vector<8x32xf32>
    %58 = arith.addf %57, %56 : vector<8x32xf32>
    %59 = arith.divf %57, %58 : vector<8x32xf32>
    %60 = arith.mulf %51, %34 : vector<8x32xf32>
    %61 = arith.mulf %45, %53 : vector<8x32xf32>
    %62 = arith.addf %60, %61 : vector<8x32xf32>
    %63 = math.tanh %62 : vector<8x32xf32>
    %64 = arith.mulf %59, %63 : vector<8x32xf32>
    %65 = vector.extract_strided_slice %6 {offsets = [16, 0], sizes = [8, 128], strides = [1, 1]} : vector<64x128xf32> to vector<8x128xf32>
    %cst_17 = arith.constant dense<0.000000e+00> : vector<8x128xf32>
    %66 = tpu.matmul %64, %2, %cst_17 {dimension_numbers = #tpu.dot_dimension_numbers<[1], [0], [0], [1], [0, 0, 1, 1], [], []>} : vector<8x32xf32>, vector<32x128xf32>, vector<8x128xf32> -> vector<8x128xf32>
    %67 = arith.addf %65, %66 : vector<8x128xf32>
    %68 = vector.extract_strided_slice %67 {offsets = [0, 0], sizes = [8, 32], strides = [1, 1]} : vector<8x128xf32> to vector<8x32xf32>
    %69 = arith.negf %68 : vector<8x32xf32>
    %70 = math.exp %69 : vector<8x32xf32>
    %cst_18 = arith.constant 1.000000e+00 : f32
    %71 = vector.broadcast %cst_18 : f32 to vector<8x32xf32>
    %72 = arith.addf %71, %70 : vector<8x32xf32>
    %73 = arith.divf %71, %72 : vector<8x32xf32>
    %74 = vector.extract_strided_slice %67 {offsets = [0, 32], sizes = [8, 32], strides = [1, 1]} : vector<8x128xf32> to vector<8x32xf32>
    %75 = arith.negf %74 : vector<8x32xf32>
    %76 = math.exp %75 : vector<8x32xf32>
    %cst_19 = arith.constant 1.000000e+00 : f32
    %77 = vector.broadcast %cst_19 : f32 to vector<8x32xf32>
    %78 = arith.addf %77, %76 : vector<8x32xf32>
    %79 = arith.divf %77, %78 : vector<8x32xf32>
    %80 = vector.extract_strided_slice %67 {offsets = [0, 64], sizes = [8, 32], strides = [1, 1]} : vector<8x128xf32> to vector<8x32xf32>
    %81 = math.tanh %80 : vector<8x32xf32>
    %82 = vector.extract_strided_slice %67 {offsets = [0, 96], sizes = [8, 32], strides = [1, 1]} : vector<8x128xf32> to vector<8x32xf32>
    %83 = arith.negf %82 : vector<8x32xf32>
    %84 = math.exp %83 : vector<8x32xf32>
    %cst_20 = arith.constant 1.000000e+00 : f32
    %85 = vector.broadcast %cst_20 : f32 to vector<8x32xf32>
    %86 = arith.addf %85, %84 : vector<8x32xf32>
    %87 = arith.divf %85, %86 : vector<8x32xf32>
    %88 = arith.mulf %79, %62 : vector<8x32xf32>
    %89 = arith.mulf %73, %81 : vector<8x32xf32>
    %90 = arith.addf %88, %89 : vector<8x32xf32>
    %91 = math.tanh %90 : vector<8x32xf32>
    %92 = arith.mulf %87, %91 : vector<8x32xf32>
    %93 = vector.extract_strided_slice %6 {offsets = [24, 0], sizes = [8, 128], strides = [1, 1]} : vector<64x128xf32> to vector<8x128xf32>
    %cst_21 = arith.constant dense<0.000000e+00> : vector<8x128xf32>
    %94 = tpu.matmul %92, %2, %cst_21 {dimension_numbers = #tpu.dot_dimension_numbers<[1], [0], [0], [1], [0, 0, 1, 1], [], []>} : vector<8x32xf32>, vector<32x128xf32>, vector<8x128xf32> -> vector<8x128xf32>
    %95 = arith.addf %93, %94 : vector<8x128xf32>
    %96 = vector.extract_strided_slice %95 {offsets = [0, 0], sizes = [8, 32], strides = [1, 1]} : vector<8x128xf32> to vector<8x32xf32>
    %97 = arith.negf %96 : vector<8x32xf32>
    %98 = math.exp %97 : vector<8x32xf32>
    %cst_22 = arith.constant 1.000000e+00 : f32
    %99 = vector.broadcast %cst_22 : f32 to vector<8x32xf32>
    %100 = arith.addf %99, %98 : vector<8x32xf32>
    %101 = arith.divf %99, %100 : vector<8x32xf32>
    %102 = vector.extract_strided_slice %95 {offsets = [0, 32], sizes = [8, 32], strides = [1, 1]} : vector<8x128xf32> to vector<8x32xf32>
    %103 = arith.negf %102 : vector<8x32xf32>
    %104 = math.exp %103 : vector<8x32xf32>
    %cst_23 = arith.constant 1.000000e+00 : f32
    %105 = vector.broadcast %cst_23 : f32 to vector<8x32xf32>
    %106 = arith.addf %105, %104 : vector<8x32xf32>
    %107 = arith.divf %105, %106 : vector<8x32xf32>
    %108 = vector.extract_strided_slice %95 {offsets = [0, 64], sizes = [8, 32], strides = [1, 1]} : vector<8x128xf32> to vector<8x32xf32>
    %109 = math.tanh %108 : vector<8x32xf32>
    %110 = vector.extract_strided_slice %95 {offsets = [0, 96], sizes = [8, 32], strides = [1, 1]} : vector<8x128xf32> to vector<8x32xf32>
    %111 = arith.negf %110 : vector<8x32xf32>
    %112 = math.exp %111 : vector<8x32xf32>
    %cst_24 = arith.constant 1.000000e+00 : f32
    %113 = vector.broadcast %cst_24 : f32 to vector<8x32xf32>
    %114 = arith.addf %113, %112 : vector<8x32xf32>
    %115 = arith.divf %113, %114 : vector<8x32xf32>
    %116 = arith.mulf %107, %90 : vector<8x32xf32>
    %117 = arith.mulf %101, %109 : vector<8x32xf32>
    %118 = arith.addf %116, %117 : vector<8x32xf32>
    %119 = math.tanh %118 : vector<8x32xf32>
    %120 = arith.mulf %115, %119 : vector<8x32xf32>
    %121 = vector.extract_strided_slice %6 {offsets = [32, 0], sizes = [8, 128], strides = [1, 1]} : vector<64x128xf32> to vector<8x128xf32>
    %cst_25 = arith.constant dense<0.000000e+00> : vector<8x128xf32>
    %122 = tpu.matmul %120, %2, %cst_25 {dimension_numbers = #tpu.dot_dimension_numbers<[1], [0], [0], [1], [0, 0, 1, 1], [], []>} : vector<8x32xf32>, vector<32x128xf32>, vector<8x128xf32> -> vector<8x128xf32>
    %123 = arith.addf %121, %122 : vector<8x128xf32>
    %124 = vector.extract_strided_slice %123 {offsets = [0, 0], sizes = [8, 32], strides = [1, 1]} : vector<8x128xf32> to vector<8x32xf32>
    %125 = arith.negf %124 : vector<8x32xf32>
    %126 = math.exp %125 : vector<8x32xf32>
    %cst_26 = arith.constant 1.000000e+00 : f32
    %127 = vector.broadcast %cst_26 : f32 to vector<8x32xf32>
    %128 = arith.addf %127, %126 : vector<8x32xf32>
    %129 = arith.divf %127, %128 : vector<8x32xf32>
    %130 = vector.extract_strided_slice %123 {offsets = [0, 32], sizes = [8, 32], strides = [1, 1]} : vector<8x128xf32> to vector<8x32xf32>
    %131 = arith.negf %130 : vector<8x32xf32>
    %132 = math.exp %131 : vector<8x32xf32>
    %cst_27 = arith.constant 1.000000e+00 : f32
    %133 = vector.broadcast %cst_27 : f32 to vector<8x32xf32>
    %134 = arith.addf %133, %132 : vector<8x32xf32>
    %135 = arith.divf %133, %134 : vector<8x32xf32>
    %136 = vector.extract_strided_slice %123 {offsets = [0, 64], sizes = [8, 32], strides = [1, 1]} : vector<8x128xf32> to vector<8x32xf32>
    %137 = math.tanh %136 : vector<8x32xf32>
    %138 = vector.extract_strided_slice %123 {offsets = [0, 96], sizes = [8, 32], strides = [1, 1]} : vector<8x128xf32> to vector<8x32xf32>
    %139 = arith.negf %138 : vector<8x32xf32>
    %140 = math.exp %139 : vector<8x32xf32>
    %cst_28 = arith.constant 1.000000e+00 : f32
    %141 = vector.broadcast %cst_28 : f32 to vector<8x32xf32>
    %142 = arith.addf %141, %140 : vector<8x32xf32>
    %143 = arith.divf %141, %142 : vector<8x32xf32>
    %144 = arith.mulf %135, %118 : vector<8x32xf32>
    %145 = arith.mulf %129, %137 : vector<8x32xf32>
    %146 = arith.addf %144, %145 : vector<8x32xf32>
    %147 = math.tanh %146 : vector<8x32xf32>
    %148 = arith.mulf %143, %147 : vector<8x32xf32>
    %149 = vector.extract_strided_slice %6 {offsets = [40, 0], sizes = [8, 128], strides = [1, 1]} : vector<64x128xf32> to vector<8x128xf32>
    %cst_29 = arith.constant dense<0.000000e+00> : vector<8x128xf32>
    %150 = tpu.matmul %148, %2, %cst_29 {dimension_numbers = #tpu.dot_dimension_numbers<[1], [0], [0], [1], [0, 0, 1, 1], [], []>} : vector<8x32xf32>, vector<32x128xf32>, vector<8x128xf32> -> vector<8x128xf32>
    %151 = arith.addf %149, %150 : vector<8x128xf32>
    %152 = vector.extract_strided_slice %151 {offsets = [0, 0], sizes = [8, 32], strides = [1, 1]} : vector<8x128xf32> to vector<8x32xf32>
    %153 = arith.negf %152 : vector<8x32xf32>
    %154 = math.exp %153 : vector<8x32xf32>
    %cst_30 = arith.constant 1.000000e+00 : f32
    %155 = vector.broadcast %cst_30 : f32 to vector<8x32xf32>
    %156 = arith.addf %155, %154 : vector<8x32xf32>
    %157 = arith.divf %155, %156 : vector<8x32xf32>
    %158 = vector.extract_strided_slice %151 {offsets = [0, 32], sizes = [8, 32], strides = [1, 1]} : vector<8x128xf32> to vector<8x32xf32>
    %159 = arith.negf %158 : vector<8x32xf32>
    %160 = math.exp %159 : vector<8x32xf32>
    %cst_31 = arith.constant 1.000000e+00 : f32
    %161 = vector.broadcast %cst_31 : f32 to vector<8x32xf32>
    %162 = arith.addf %161, %160 : vector<8x32xf32>
    %163 = arith.divf %161, %162 : vector<8x32xf32>
    %164 = vector.extract_strided_slice %151 {offsets = [0, 64], sizes = [8, 32], strides = [1, 1]} : vector<8x128xf32> to vector<8x32xf32>
    %165 = math.tanh %164 : vector<8x32xf32>
    %166 = vector.extract_strided_slice %151 {offsets = [0, 96], sizes = [8, 32], strides = [1, 1]} : vector<8x128xf32> to vector<8x32xf32>
    %167 = arith.negf %166 : vector<8x32xf32>
    %168 = math.exp %167 : vector<8x32xf32>
    %cst_32 = arith.constant 1.000000e+00 : f32
    %169 = vector.broadcast %cst_32 : f32 to vector<8x32xf32>
    %170 = arith.addf %169, %168 : vector<8x32xf32>
    %171 = arith.divf %169, %170 : vector<8x32xf32>
    %172 = arith.mulf %163, %146 : vector<8x32xf32>
    %173 = arith.mulf %157, %165 : vector<8x32xf32>
    %174 = arith.addf %172, %173 : vector<8x32xf32>
    %175 = math.tanh %174 : vector<8x32xf32>
    %176 = arith.mulf %171, %175 : vector<8x32xf32>
    %177 = vector.extract_strided_slice %6 {offsets = [48, 0], sizes = [8, 128], strides = [1, 1]} : vector<64x128xf32> to vector<8x128xf32>
    %cst_33 = arith.constant dense<0.000000e+00> : vector<8x128xf32>
    %178 = tpu.matmul %176, %2, %cst_33 {dimension_numbers = #tpu.dot_dimension_numbers<[1], [0], [0], [1], [0, 0, 1, 1], [], []>} : vector<8x32xf32>, vector<32x128xf32>, vector<8x128xf32> -> vector<8x128xf32>
    %179 = arith.addf %177, %178 : vector<8x128xf32>
    %180 = vector.extract_strided_slice %179 {offsets = [0, 0], sizes = [8, 32], strides = [1, 1]} : vector<8x128xf32> to vector<8x32xf32>
    %181 = arith.negf %180 : vector<8x32xf32>
    %182 = math.exp %181 : vector<8x32xf32>
    %cst_34 = arith.constant 1.000000e+00 : f32
    %183 = vector.broadcast %cst_34 : f32 to vector<8x32xf32>
    %184 = arith.addf %183, %182 : vector<8x32xf32>
    %185 = arith.divf %183, %184 : vector<8x32xf32>
    %186 = vector.extract_strided_slice %179 {offsets = [0, 32], sizes = [8, 32], strides = [1, 1]} : vector<8x128xf32> to vector<8x32xf32>
    %187 = arith.negf %186 : vector<8x32xf32>
    %188 = math.exp %187 : vector<8x32xf32>
    %cst_35 = arith.constant 1.000000e+00 : f32
    %189 = vector.broadcast %cst_35 : f32 to vector<8x32xf32>
    %190 = arith.addf %189, %188 : vector<8x32xf32>
    %191 = arith.divf %189, %190 : vector<8x32xf32>
    %192 = vector.extract_strided_slice %179 {offsets = [0, 64], sizes = [8, 32], strides = [1, 1]} : vector<8x128xf32> to vector<8x32xf32>
    %193 = math.tanh %192 : vector<8x32xf32>
    %194 = vector.extract_strided_slice %179 {offsets = [0, 96], sizes = [8, 32], strides = [1, 1]} : vector<8x128xf32> to vector<8x32xf32>
    %195 = arith.negf %194 : vector<8x32xf32>
    %196 = math.exp %195 : vector<8x32xf32>
    %cst_36 = arith.constant 1.000000e+00 : f32
    %197 = vector.broadcast %cst_36 : f32 to vector<8x32xf32>
    %198 = arith.addf %197, %196 : vector<8x32xf32>
    %199 = arith.divf %197, %198 : vector<8x32xf32>
    %200 = arith.mulf %191, %174 : vector<8x32xf32>
    %201 = arith.mulf %185, %193 : vector<8x32xf32>
    %202 = arith.addf %200, %201 : vector<8x32xf32>
    %203 = math.tanh %202 : vector<8x32xf32>
    %204 = arith.mulf %199, %203 : vector<8x32xf32>
    %205 = vector.extract_strided_slice %6 {offsets = [56, 0], sizes = [8, 128], strides = [1, 1]} : vector<64x128xf32> to vector<8x128xf32>
    %cst_37 = arith.constant dense<0.000000e+00> : vector<8x128xf32>
    %206 = tpu.matmul %204, %2, %cst_37 {dimension_numbers = #tpu.dot_dimension_numbers<[1], [0], [0], [1], [0, 0, 1, 1], [], []>} : vector<8x32xf32>, vector<32x128xf32>, vector<8x128xf32> -> vector<8x128xf32>
    %207 = arith.addf %205, %206 : vector<8x128xf32>
    %208 = vector.extract_strided_slice %207 {offsets = [0, 0], sizes = [8, 32], strides = [1, 1]} : vector<8x128xf32> to vector<8x32xf32>
    %209 = arith.negf %208 : vector<8x32xf32>
    %210 = math.exp %209 : vector<8x32xf32>
    %cst_38 = arith.constant 1.000000e+00 : f32
    %211 = vector.broadcast %cst_38 : f32 to vector<8x32xf32>
    %212 = arith.addf %211, %210 : vector<8x32xf32>
    %213 = arith.divf %211, %212 : vector<8x32xf32>
    %214 = vector.extract_strided_slice %207 {offsets = [0, 32], sizes = [8, 32], strides = [1, 1]} : vector<8x128xf32> to vector<8x32xf32>
    %215 = arith.negf %214 : vector<8x32xf32>
    %216 = math.exp %215 : vector<8x32xf32>
    %cst_39 = arith.constant 1.000000e+00 : f32
    %217 = vector.broadcast %cst_39 : f32 to vector<8x32xf32>
    %218 = arith.addf %217, %216 : vector<8x32xf32>
    %219 = arith.divf %217, %218 : vector<8x32xf32>
    %220 = vector.extract_strided_slice %207 {offsets = [0, 64], sizes = [8, 32], strides = [1, 1]} : vector<8x128xf32> to vector<8x32xf32>
    %221 = math.tanh %220 : vector<8x32xf32>
    %222 = vector.extract_strided_slice %207 {offsets = [0, 96], sizes = [8, 32], strides = [1, 1]} : vector<8x128xf32> to vector<8x32xf32>
    %223 = arith.negf %222 : vector<8x32xf32>
    %224 = math.exp %223 : vector<8x32xf32>
    %cst_40 = arith.constant 1.000000e+00 : f32
    %225 = vector.broadcast %cst_40 : f32 to vector<8x32xf32>
    %226 = arith.addf %225, %224 : vector<8x32xf32>
    %227 = arith.divf %225, %226 : vector<8x32xf32>
    %228 = arith.mulf %219, %202 : vector<8x32xf32>
    %229 = arith.mulf %213, %221 : vector<8x32xf32>
    %230 = arith.addf %228, %229 : vector<8x32xf32>
    %231 = math.tanh %230 : vector<8x32xf32>
    %232 = arith.mulf %227, %231 : vector<8x32xf32>
    %233 = tpu.concatenate %36, %64, %92, %120, %148, %176, %204, %232 in 0 : vector<8x32xf32>, vector<8x32xf32>, vector<8x32xf32>, vector<8x32xf32>, vector<8x32xf32>, vector<8x32xf32>, vector<8x32xf32>, vector<8x32xf32> -> vector<64x32xf32>
    %c0_41 = arith.constant 0 : index
    %c0_42 = arith.constant 0 : index
    %234 = vector.load %arg4[%c0_41, %c0_42] : memref<32x128xf32, #tpu.memory_space<vmem>>, vector<32x128xf32>
    %c0_43 = arith.constant 0 : index
    %c0_44 = arith.constant 0 : index
    %235 = vector.load %arg5[%c0_43, %c0_44] : memref<32x128xf32, #tpu.memory_space<vmem>>, vector<32x128xf32>
    %c0_45 = arith.constant 0 : index
    %c0_46 = arith.constant 0 : index
    %236 = vector.load %arg6[%c0_45, %c0_46] : memref<1x128xf32, #tpu.memory_space<vmem>>, vector<1x128xf32>
    %cst_47 = arith.constant dense<0.000000e+00> : vector<64x128xf32>
    %237 = tpu.matmul %233, %234, %cst_47 {dimension_numbers = #tpu.dot_dimension_numbers<[1], [0], [0], [1], [0, 0, 1, 1], [], []>} : vector<64x32xf32>, vector<32x128xf32>, vector<64x128xf32> -> vector<64x128xf32>
    %238 = vector.broadcast %236 : vector<1x128xf32> to vector<64x128xf32>
    %239 = arith.addf %237, %238 : vector<64x128xf32>
    %cst_48 = arith.constant 0.000000e+00 : f32
    %240 = vector.broadcast %cst_48 : f32 to vector<8x32xf32>
    %cst_49 = arith.constant 0.000000e+00 : f32
    %241 = vector.broadcast %cst_49 : f32 to vector<8x32xf32>
    %242 = vector.extract_strided_slice %239 {offsets = [0, 0], sizes = [8, 128], strides = [1, 1]} : vector<64x128xf32> to vector<8x128xf32>
    %cst_50 = arith.constant dense<0.000000e+00> : vector<8x128xf32>
    %243 = tpu.matmul %240, %235, %cst_50 {dimension_numbers = #tpu.dot_dimension_numbers<[1], [0], [0], [1], [0, 0, 1, 1], [], []>} : vector<8x32xf32>, vector<32x128xf32>, vector<8x128xf32> -> vector<8x128xf32>
    %244 = arith.addf %242, %243 : vector<8x128xf32>
    %245 = vector.extract_strided_slice %244 {offsets = [0, 0], sizes = [8, 32], strides = [1, 1]} : vector<8x128xf32> to vector<8x32xf32>
    %246 = arith.negf %245 : vector<8x32xf32>
    %247 = math.exp %246 : vector<8x32xf32>
    %cst_51 = arith.constant 1.000000e+00 : f32
    %248 = vector.broadcast %cst_51 : f32 to vector<8x32xf32>
    %249 = arith.addf %248, %247 : vector<8x32xf32>
    %250 = arith.divf %248, %249 : vector<8x32xf32>
    %251 = vector.extract_strided_slice %244 {offsets = [0, 32], sizes = [8, 32], strides = [1, 1]} : vector<8x128xf32> to vector<8x32xf32>
    %252 = arith.negf %251 : vector<8x32xf32>
    %253 = math.exp %252 : vector<8x32xf32>
    %cst_52 = arith.constant 1.000000e+00 : f32
    %254 = vector.broadcast %cst_52 : f32 to vector<8x32xf32>
    %255 = arith.addf %254, %253 : vector<8x32xf32>
    %256 = arith.divf %254, %255 : vector<8x32xf32>
    %257 = vector.extract_strided_slice %244 {offsets = [0, 64], sizes = [8, 32], strides = [1, 1]} : vector<8x128xf32> to vector<8x32xf32>
    %258 = math.tanh %257 : vector<8x32xf32>
    %259 = vector.extract_strided_slice %244 {offsets = [0, 96], sizes = [8, 32], strides = [1, 1]} : vector<8x128xf32> to vector<8x32xf32>
    %260 = arith.negf %259 : vector<8x32xf32>
    %261 = math.exp %260 : vector<8x32xf32>
    %cst_53 = arith.constant 1.000000e+00 : f32
    %262 = vector.broadcast %cst_53 : f32 to vector<8x32xf32>
    %263 = arith.addf %262, %261 : vector<8x32xf32>
    %264 = arith.divf %262, %263 : vector<8x32xf32>
    %265 = arith.mulf %256, %241 : vector<8x32xf32>
    %266 = arith.mulf %250, %258 : vector<8x32xf32>
    %267 = arith.addf %265, %266 : vector<8x32xf32>
    %268 = math.tanh %267 : vector<8x32xf32>
    %269 = arith.mulf %264, %268 : vector<8x32xf32>
    %270 = vector.extract_strided_slice %239 {offsets = [8, 0], sizes = [8, 128], strides = [1, 1]} : vector<64x128xf32> to vector<8x128xf32>
    %cst_54 = arith.constant dense<0.000000e+00> : vector<8x128xf32>
    %271 = tpu.matmul %269, %235, %cst_54 {dimension_numbers = #tpu.dot_dimension_numbers<[1], [0], [0], [1], [0, 0, 1, 1], [], []>} : vector<8x32xf32>, vector<32x128xf32>, vector<8x128xf32> -> vector<8x128xf32>
    %272 = arith.addf %270, %271 : vector<8x128xf32>
    %273 = vector.extract_strided_slice %272 {offsets = [0, 0], sizes = [8, 32], strides = [1, 1]} : vector<8x128xf32> to vector<8x32xf32>
    %274 = arith.negf %273 : vector<8x32xf32>
    %275 = math.exp %274 : vector<8x32xf32>
    %cst_55 = arith.constant 1.000000e+00 : f32
    %276 = vector.broadcast %cst_55 : f32 to vector<8x32xf32>
    %277 = arith.addf %276, %275 : vector<8x32xf32>
    %278 = arith.divf %276, %277 : vector<8x32xf32>
    %279 = vector.extract_strided_slice %272 {offsets = [0, 32], sizes = [8, 32], strides = [1, 1]} : vector<8x128xf32> to vector<8x32xf32>
    %280 = arith.negf %279 : vector<8x32xf32>
    %281 = math.exp %280 : vector<8x32xf32>
    %cst_56 = arith.constant 1.000000e+00 : f32
    %282 = vector.broadcast %cst_56 : f32 to vector<8x32xf32>
    %283 = arith.addf %282, %281 : vector<8x32xf32>
    %284 = arith.divf %282, %283 : vector<8x32xf32>
    %285 = vector.extract_strided_slice %272 {offsets = [0, 64], sizes = [8, 32], strides = [1, 1]} : vector<8x128xf32> to vector<8x32xf32>
    %286 = math.tanh %285 : vector<8x32xf32>
    %287 = vector.extract_strided_slice %272 {offsets = [0, 96], sizes = [8, 32], strides = [1, 1]} : vector<8x128xf32> to vector<8x32xf32>
    %288 = arith.negf %287 : vector<8x32xf32>
    %289 = math.exp %288 : vector<8x32xf32>
    %cst_57 = arith.constant 1.000000e+00 : f32
    %290 = vector.broadcast %cst_57 : f32 to vector<8x32xf32>
    %291 = arith.addf %290, %289 : vector<8x32xf32>
    %292 = arith.divf %290, %291 : vector<8x32xf32>
    %293 = arith.mulf %284, %267 : vector<8x32xf32>
    %294 = arith.mulf %278, %286 : vector<8x32xf32>
    %295 = arith.addf %293, %294 : vector<8x32xf32>
    %296 = math.tanh %295 : vector<8x32xf32>
    %297 = arith.mulf %292, %296 : vector<8x32xf32>
    %298 = vector.extract_strided_slice %239 {offsets = [16, 0], sizes = [8, 128], strides = [1, 1]} : vector<64x128xf32> to vector<8x128xf32>
    %cst_58 = arith.constant dense<0.000000e+00> : vector<8x128xf32>
    %299 = tpu.matmul %297, %235, %cst_58 {dimension_numbers = #tpu.dot_dimension_numbers<[1], [0], [0], [1], [0, 0, 1, 1], [], []>} : vector<8x32xf32>, vector<32x128xf32>, vector<8x128xf32> -> vector<8x128xf32>
    %300 = arith.addf %298, %299 : vector<8x128xf32>
    %301 = vector.extract_strided_slice %300 {offsets = [0, 0], sizes = [8, 32], strides = [1, 1]} : vector<8x128xf32> to vector<8x32xf32>
    %302 = arith.negf %301 : vector<8x32xf32>
    %303 = math.exp %302 : vector<8x32xf32>
    %cst_59 = arith.constant 1.000000e+00 : f32
    %304 = vector.broadcast %cst_59 : f32 to vector<8x32xf32>
    %305 = arith.addf %304, %303 : vector<8x32xf32>
    %306 = arith.divf %304, %305 : vector<8x32xf32>
    %307 = vector.extract_strided_slice %300 {offsets = [0, 32], sizes = [8, 32], strides = [1, 1]} : vector<8x128xf32> to vector<8x32xf32>
    %308 = arith.negf %307 : vector<8x32xf32>
    %309 = math.exp %308 : vector<8x32xf32>
    %cst_60 = arith.constant 1.000000e+00 : f32
    %310 = vector.broadcast %cst_60 : f32 to vector<8x32xf32>
    %311 = arith.addf %310, %309 : vector<8x32xf32>
    %312 = arith.divf %310, %311 : vector<8x32xf32>
    %313 = vector.extract_strided_slice %300 {offsets = [0, 64], sizes = [8, 32], strides = [1, 1]} : vector<8x128xf32> to vector<8x32xf32>
    %314 = math.tanh %313 : vector<8x32xf32>
    %315 = vector.extract_strided_slice %300 {offsets = [0, 96], sizes = [8, 32], strides = [1, 1]} : vector<8x128xf32> to vector<8x32xf32>
    %316 = arith.negf %315 : vector<8x32xf32>
    %317 = math.exp %316 : vector<8x32xf32>
    %cst_61 = arith.constant 1.000000e+00 : f32
    %318 = vector.broadcast %cst_61 : f32 to vector<8x32xf32>
    %319 = arith.addf %318, %317 : vector<8x32xf32>
    %320 = arith.divf %318, %319 : vector<8x32xf32>
    %321 = arith.mulf %312, %295 : vector<8x32xf32>
    %322 = arith.mulf %306, %314 : vector<8x32xf32>
    %323 = arith.addf %321, %322 : vector<8x32xf32>
    %324 = math.tanh %323 : vector<8x32xf32>
    %325 = arith.mulf %320, %324 : vector<8x32xf32>
    %326 = vector.extract_strided_slice %239 {offsets = [24, 0], sizes = [8, 128], strides = [1, 1]} : vector<64x128xf32> to vector<8x128xf32>
    %cst_62 = arith.constant dense<0.000000e+00> : vector<8x128xf32>
    %327 = tpu.matmul %325, %235, %cst_62 {dimension_numbers = #tpu.dot_dimension_numbers<[1], [0], [0], [1], [0, 0, 1, 1], [], []>} : vector<8x32xf32>, vector<32x128xf32>, vector<8x128xf32> -> vector<8x128xf32>
    %328 = arith.addf %326, %327 : vector<8x128xf32>
    %329 = vector.extract_strided_slice %328 {offsets = [0, 0], sizes = [8, 32], strides = [1, 1]} : vector<8x128xf32> to vector<8x32xf32>
    %330 = arith.negf %329 : vector<8x32xf32>
    %331 = math.exp %330 : vector<8x32xf32>
    %cst_63 = arith.constant 1.000000e+00 : f32
    %332 = vector.broadcast %cst_63 : f32 to vector<8x32xf32>
    %333 = arith.addf %332, %331 : vector<8x32xf32>
    %334 = arith.divf %332, %333 : vector<8x32xf32>
    %335 = vector.extract_strided_slice %328 {offsets = [0, 32], sizes = [8, 32], strides = [1, 1]} : vector<8x128xf32> to vector<8x32xf32>
    %336 = arith.negf %335 : vector<8x32xf32>
    %337 = math.exp %336 : vector<8x32xf32>
    %cst_64 = arith.constant 1.000000e+00 : f32
    %338 = vector.broadcast %cst_64 : f32 to vector<8x32xf32>
    %339 = arith.addf %338, %337 : vector<8x32xf32>
    %340 = arith.divf %338, %339 : vector<8x32xf32>
    %341 = vector.extract_strided_slice %328 {offsets = [0, 64], sizes = [8, 32], strides = [1, 1]} : vector<8x128xf32> to vector<8x32xf32>
    %342 = math.tanh %341 : vector<8x32xf32>
    %343 = vector.extract_strided_slice %328 {offsets = [0, 96], sizes = [8, 32], strides = [1, 1]} : vector<8x128xf32> to vector<8x32xf32>
    %344 = arith.negf %343 : vector<8x32xf32>
    %345 = math.exp %344 : vector<8x32xf32>
    %cst_65 = arith.constant 1.000000e+00 : f32
    %346 = vector.broadcast %cst_65 : f32 to vector<8x32xf32>
    %347 = arith.addf %346, %345 : vector<8x32xf32>
    %348 = arith.divf %346, %347 : vector<8x32xf32>
    %349 = arith.mulf %340, %323 : vector<8x32xf32>
    %350 = arith.mulf %334, %342 : vector<8x32xf32>
    %351 = arith.addf %349, %350 : vector<8x32xf32>
    %352 = math.tanh %351 : vector<8x32xf32>
    %353 = arith.mulf %348, %352 : vector<8x32xf32>
    %354 = vector.extract_strided_slice %239 {offsets = [32, 0], sizes = [8, 128], strides = [1, 1]} : vector<64x128xf32> to vector<8x128xf32>
    %cst_66 = arith.constant dense<0.000000e+00> : vector<8x128xf32>
    %355 = tpu.matmul %353, %235, %cst_66 {dimension_numbers = #tpu.dot_dimension_numbers<[1], [0], [0], [1], [0, 0, 1, 1], [], []>} : vector<8x32xf32>, vector<32x128xf32>, vector<8x128xf32> -> vector<8x128xf32>
    %356 = arith.addf %354, %355 : vector<8x128xf32>
    %357 = vector.extract_strided_slice %356 {offsets = [0, 0], sizes = [8, 32], strides = [1, 1]} : vector<8x128xf32> to vector<8x32xf32>
    %358 = arith.negf %357 : vector<8x32xf32>
    %359 = math.exp %358 : vector<8x32xf32>
    %cst_67 = arith.constant 1.000000e+00 : f32
    %360 = vector.broadcast %cst_67 : f32 to vector<8x32xf32>
    %361 = arith.addf %360, %359 : vector<8x32xf32>
    %362 = arith.divf %360, %361 : vector<8x32xf32>
    %363 = vector.extract_strided_slice %356 {offsets = [0, 32], sizes = [8, 32], strides = [1, 1]} : vector<8x128xf32> to vector<8x32xf32>
    %364 = arith.negf %363 : vector<8x32xf32>
    %365 = math.exp %364 : vector<8x32xf32>
    %cst_68 = arith.constant 1.000000e+00 : f32
    %366 = vector.broadcast %cst_68 : f32 to vector<8x32xf32>
    %367 = arith.addf %366, %365 : vector<8x32xf32>
    %368 = arith.divf %366, %367 : vector<8x32xf32>
    %369 = vector.extract_strided_slice %356 {offsets = [0, 64], sizes = [8, 32], strides = [1, 1]} : vector<8x128xf32> to vector<8x32xf32>
    %370 = math.tanh %369 : vector<8x32xf32>
    %371 = vector.extract_strided_slice %356 {offsets = [0, 96], sizes = [8, 32], strides = [1, 1]} : vector<8x128xf32> to vector<8x32xf32>
    %372 = arith.negf %371 : vector<8x32xf32>
    %373 = math.exp %372 : vector<8x32xf32>
    %cst_69 = arith.constant 1.000000e+00 : f32
    %374 = vector.broadcast %cst_69 : f32 to vector<8x32xf32>
    %375 = arith.addf %374, %373 : vector<8x32xf32>
    %376 = arith.divf %374, %375 : vector<8x32xf32>
    %377 = arith.mulf %368, %351 : vector<8x32xf32>
    %378 = arith.mulf %362, %370 : vector<8x32xf32>
    %379 = arith.addf %377, %378 : vector<8x32xf32>
    %380 = math.tanh %379 : vector<8x32xf32>
    %381 = arith.mulf %376, %380 : vector<8x32xf32>
    %382 = vector.extract_strided_slice %239 {offsets = [40, 0], sizes = [8, 128], strides = [1, 1]} : vector<64x128xf32> to vector<8x128xf32>
    %cst_70 = arith.constant dense<0.000000e+00> : vector<8x128xf32>
    %383 = tpu.matmul %381, %235, %cst_70 {dimension_numbers = #tpu.dot_dimension_numbers<[1], [0], [0], [1], [0, 0, 1, 1], [], []>} : vector<8x32xf32>, vector<32x128xf32>, vector<8x128xf32> -> vector<8x128xf32>
    %384 = arith.addf %382, %383 : vector<8x128xf32>
    %385 = vector.extract_strided_slice %384 {offsets = [0, 0], sizes = [8, 32], strides = [1, 1]} : vector<8x128xf32> to vector<8x32xf32>
    %386 = arith.negf %385 : vector<8x32xf32>
    %387 = math.exp %386 : vector<8x32xf32>
    %cst_71 = arith.constant 1.000000e+00 : f32
    %388 = vector.broadcast %cst_71 : f32 to vector<8x32xf32>
    %389 = arith.addf %388, %387 : vector<8x32xf32>
    %390 = arith.divf %388, %389 : vector<8x32xf32>
    %391 = vector.extract_strided_slice %384 {offsets = [0, 32], sizes = [8, 32], strides = [1, 1]} : vector<8x128xf32> to vector<8x32xf32>
    %392 = arith.negf %391 : vector<8x32xf32>
    %393 = math.exp %392 : vector<8x32xf32>
    %cst_72 = arith.constant 1.000000e+00 : f32
    %394 = vector.broadcast %cst_72 : f32 to vector<8x32xf32>
    %395 = arith.addf %394, %393 : vector<8x32xf32>
    %396 = arith.divf %394, %395 : vector<8x32xf32>
    %397 = vector.extract_strided_slice %384 {offsets = [0, 64], sizes = [8, 32], strides = [1, 1]} : vector<8x128xf32> to vector<8x32xf32>
    %398 = math.tanh %397 : vector<8x32xf32>
    %399 = vector.extract_strided_slice %384 {offsets = [0, 96], sizes = [8, 32], strides = [1, 1]} : vector<8x128xf32> to vector<8x32xf32>
    %400 = arith.negf %399 : vector<8x32xf32>
    %401 = math.exp %400 : vector<8x32xf32>
    %cst_73 = arith.constant 1.000000e+00 : f32
    %402 = vector.broadcast %cst_73 : f32 to vector<8x32xf32>
    %403 = arith.addf %402, %401 : vector<8x32xf32>
    %404 = arith.divf %402, %403 : vector<8x32xf32>
    %405 = arith.mulf %396, %379 : vector<8x32xf32>
    %406 = arith.mulf %390, %398 : vector<8x32xf32>
    %407 = arith.addf %405, %406 : vector<8x32xf32>
    %408 = math.tanh %407 : vector<8x32xf32>
    %409 = arith.mulf %404, %408 : vector<8x32xf32>
    %410 = vector.extract_strided_slice %239 {offsets = [48, 0], sizes = [8, 128], strides = [1, 1]} : vector<64x128xf32> to vector<8x128xf32>
    %cst_74 = arith.constant dense<0.000000e+00> : vector<8x128xf32>
    %411 = tpu.matmul %409, %235, %cst_74 {dimension_numbers = #tpu.dot_dimension_numbers<[1], [0], [0], [1], [0, 0, 1, 1], [], []>} : vector<8x32xf32>, vector<32x128xf32>, vector<8x128xf32> -> vector<8x128xf32>
    %412 = arith.addf %410, %411 : vector<8x128xf32>
    %413 = vector.extract_strided_slice %412 {offsets = [0, 0], sizes = [8, 32], strides = [1, 1]} : vector<8x128xf32> to vector<8x32xf32>
    %414 = arith.negf %413 : vector<8x32xf32>
    %415 = math.exp %414 : vector<8x32xf32>
    %cst_75 = arith.constant 1.000000e+00 : f32
    %416 = vector.broadcast %cst_75 : f32 to vector<8x32xf32>
    %417 = arith.addf %416, %415 : vector<8x32xf32>
    %418 = arith.divf %416, %417 : vector<8x32xf32>
    %419 = vector.extract_strided_slice %412 {offsets = [0, 32], sizes = [8, 32], strides = [1, 1]} : vector<8x128xf32> to vector<8x32xf32>
    %420 = arith.negf %419 : vector<8x32xf32>
    %421 = math.exp %420 : vector<8x32xf32>
    %cst_76 = arith.constant 1.000000e+00 : f32
    %422 = vector.broadcast %cst_76 : f32 to vector<8x32xf32>
    %423 = arith.addf %422, %421 : vector<8x32xf32>
    %424 = arith.divf %422, %423 : vector<8x32xf32>
    %425 = vector.extract_strided_slice %412 {offsets = [0, 64], sizes = [8, 32], strides = [1, 1]} : vector<8x128xf32> to vector<8x32xf32>
    %426 = math.tanh %425 : vector<8x32xf32>
    %427 = vector.extract_strided_slice %412 {offsets = [0, 96], sizes = [8, 32], strides = [1, 1]} : vector<8x128xf32> to vector<8x32xf32>
    %428 = arith.negf %427 : vector<8x32xf32>
    %429 = math.exp %428 : vector<8x32xf32>
    %cst_77 = arith.constant 1.000000e+00 : f32
    %430 = vector.broadcast %cst_77 : f32 to vector<8x32xf32>
    %431 = arith.addf %430, %429 : vector<8x32xf32>
    %432 = arith.divf %430, %431 : vector<8x32xf32>
    %433 = arith.mulf %424, %407 : vector<8x32xf32>
    %434 = arith.mulf %418, %426 : vector<8x32xf32>
    %435 = arith.addf %433, %434 : vector<8x32xf32>
    %436 = math.tanh %435 : vector<8x32xf32>
    %437 = arith.mulf %432, %436 : vector<8x32xf32>
    %438 = vector.extract_strided_slice %239 {offsets = [56, 0], sizes = [8, 128], strides = [1, 1]} : vector<64x128xf32> to vector<8x128xf32>
    %cst_78 = arith.constant dense<0.000000e+00> : vector<8x128xf32>
    %439 = tpu.matmul %437, %235, %cst_78 {dimension_numbers = #tpu.dot_dimension_numbers<[1], [0], [0], [1], [0, 0, 1, 1], [], []>} : vector<8x32xf32>, vector<32x128xf32>, vector<8x128xf32> -> vector<8x128xf32>
    %440 = arith.addf %438, %439 : vector<8x128xf32>
    %441 = vector.extract_strided_slice %440 {offsets = [0, 0], sizes = [8, 32], strides = [1, 1]} : vector<8x128xf32> to vector<8x32xf32>
    %442 = arith.negf %441 : vector<8x32xf32>
    %443 = math.exp %442 : vector<8x32xf32>
    %cst_79 = arith.constant 1.000000e+00 : f32
    %444 = vector.broadcast %cst_79 : f32 to vector<8x32xf32>
    %445 = arith.addf %444, %443 : vector<8x32xf32>
    %446 = arith.divf %444, %445 : vector<8x32xf32>
    %447 = vector.extract_strided_slice %440 {offsets = [0, 32], sizes = [8, 32], strides = [1, 1]} : vector<8x128xf32> to vector<8x32xf32>
    %448 = arith.negf %447 : vector<8x32xf32>
    %449 = math.exp %448 : vector<8x32xf32>
    %cst_80 = arith.constant 1.000000e+00 : f32
    %450 = vector.broadcast %cst_80 : f32 to vector<8x32xf32>
    %451 = arith.addf %450, %449 : vector<8x32xf32>
    %452 = arith.divf %450, %451 : vector<8x32xf32>
    %453 = vector.extract_strided_slice %440 {offsets = [0, 64], sizes = [8, 32], strides = [1, 1]} : vector<8x128xf32> to vector<8x32xf32>
    %454 = math.tanh %453 : vector<8x32xf32>
    %455 = vector.extract_strided_slice %440 {offsets = [0, 96], sizes = [8, 32], strides = [1, 1]} : vector<8x128xf32> to vector<8x32xf32>
    %456 = arith.negf %455 : vector<8x32xf32>
    %457 = math.exp %456 : vector<8x32xf32>
    %cst_81 = arith.constant 1.000000e+00 : f32
    %458 = vector.broadcast %cst_81 : f32 to vector<8x32xf32>
    %459 = arith.addf %458, %457 : vector<8x32xf32>
    %460 = arith.divf %458, %459 : vector<8x32xf32>
    %461 = arith.mulf %452, %435 : vector<8x32xf32>
    %462 = arith.mulf %446, %454 : vector<8x32xf32>
    %463 = arith.addf %461, %462 : vector<8x32xf32>
    %464 = math.tanh %463 : vector<8x32xf32>
    %465 = arith.mulf %460, %464 : vector<8x32xf32>
    %466 = tpu.concatenate %269, %297, %325, %353, %381, %409, %437, %465 in 0 : vector<8x32xf32>, vector<8x32xf32>, vector<8x32xf32>, vector<8x32xf32>, vector<8x32xf32>, vector<8x32xf32>, vector<8x32xf32>, vector<8x32xf32> -> vector<64x32xf32>
    %c0_82 = arith.constant 0 : index
    %c0_83 = arith.constant 0 : index
    %467 = vector.load %arg7[%c0_82, %c0_83] : memref<32x80xf32, #tpu.memory_space<vmem>>, vector<32x80xf32>
    %cst_84 = arith.constant dense<0.000000e+00> : vector<64x80xf32>
    %468 = tpu.matmul %466, %467, %cst_84 {dimension_numbers = #tpu.dot_dimension_numbers<[1], [0], [0], [1], [0, 0, 1, 1], [], []>} : vector<64x32xf32>, vector<32x80xf32>, vector<64x80xf32> -> vector<64x80xf32>
    %c0_85 = arith.constant 0 : index
    %c0_86 = arith.constant 0 : index
    %469 = vector.load %arg8[%c0_85, %c0_86] : memref<1x80xf32, #tpu.memory_space<vmem>>, vector<1x80xf32>
    %470 = vector.broadcast %469 : vector<1x80xf32> to vector<64x80xf32>
    %471 = arith.addf %468, %470 : vector<64x80xf32>
    %cst_87 = arith.constant 0.000000e+00 : f32
    %472 = vector.broadcast %cst_87 : f32 to vector<64x80xf32>
    %473 = arith.maximumf %471, %472 : vector<64x80xf32>
    %c0_88 = arith.constant 0 : index
    %c0_89 = arith.constant 0 : index
    %474 = vector.load %arg9[%c0_88, %c0_89] : memref<80x10xf32, #tpu.memory_space<vmem>>, vector<80x10xf32>
    %cst_90 = arith.constant dense<0.000000e+00> : vector<64x10xf32>
    %475 = tpu.matmul %473, %474, %cst_90 {dimension_numbers = #tpu.dot_dimension_numbers<[1], [0], [0], [1], [0, 0, 1, 1], [], []>} : vector<64x80xf32>, vector<80x10xf32>, vector<64x10xf32> -> vector<64x10xf32>
    %c0_91 = arith.constant 0 : index
    %c0_92 = arith.constant 0 : index
    %476 = vector.load %arg10[%c0_91, %c0_92] : memref<1x10xf32, #tpu.memory_space<vmem>>, vector<1x10xf32>
    %477 = vector.broadcast %476 : vector<1x10xf32> to vector<64x10xf32>
    %478 = arith.addf %475, %477 : vector<64x10xf32>
    %cst_93 = arith.constant 0.000000e+00 : f32
    %479 = vector.broadcast %cst_93 : f32 to vector<64x10xf32>
    %480 = arith.maximumf %478, %479 : vector<64x10xf32>
    %c0_94 = arith.constant 0 : index
    %c0_95 = arith.constant 0 : index
    %481 = vector.load %arg11[%c0_94, %c0_95] : memref<10x4xf32, #tpu.memory_space<vmem>>, vector<10x4xf32>
    %cst_96 = arith.constant dense<0.000000e+00> : vector<64x4xf32>
    %482 = tpu.matmul %480, %481, %cst_96 {dimension_numbers = #tpu.dot_dimension_numbers<[1], [0], [0], [1], [0, 0, 1, 1], [], []>} : vector<64x10xf32>, vector<10x4xf32>, vector<64x4xf32> -> vector<64x4xf32>
    %c0_97 = arith.constant 0 : index
    %c0_98 = arith.constant 0 : index
    %483 = vector.load %arg12[%c0_97, %c0_98] : memref<1x4xf32, #tpu.memory_space<vmem>>, vector<1x4xf32>
    %484 = vector.broadcast %483 : vector<1x4xf32> to vector<64x4xf32>
    %485 = arith.addf %482, %484 : vector<64x4xf32>
    %c0_99 = arith.constant 0 : index
    %c0_100 = arith.constant 0 : index
    %486 = vector.load %arg13[%c0_99, %c0_100] : memref<64x4xf32, #tpu.memory_space<vmem>>, vector<64x4xf32>
    tpu.vector_store %arg13[%c0_99, %c0_100], %485 {strides = array<i32>} : memref<64x4xf32, #tpu.memory_space<vmem>>, vector<64x4xf32>,
    return
  }
}

</mosaic_0001>

<llo_original>
// kernel: tpu_custom_call.1
$region0: #{tpu_custom_call.1}
  #allocation0 [shape = 'u32[]', space=smem, size = 0x4, offset = 0x4, fixed_abs, tag = 'smem constant byte address 0x4 - core index']
  #allocation1 [shape = 'u32[144,128]{1,0:T(1,128)}', space=vmem, size = 0x12000, scoped, tag = 'internal scratch']
  %s0 = inlined_call_operand.vmem [shape: f32[64,16], index: 0, kind: input, shape index: {}]
  %s1 = inlined_call_operand.vmem [shape: f32[16,128], index: 1, kind: input, shape index: {}]
  %s2 = inlined_call_operand.vmem [shape: f32[32,128], index: 2, kind: input, shape index: {}]
  %s3 = inlined_call_operand.vmem [shape: f32[1,128], index: 3, kind: input, shape index: {}]
  %s4 = inlined_call_operand.vmem [shape: f32[32,128], index: 4, kind: input, shape index: {}]
  %s5 = inlined_call_operand.vmem [shape: f32[32,128], index: 5, kind: input, shape index: {}]
  %s6 = inlined_call_operand.vmem [shape: f32[1,128], index: 6, kind: input, shape index: {}]
  %s7 = inlined_call_operand.vmem [shape: f32[32,80], index: 7, kind: input, shape index: {}]
  %s8 = inlined_call_operand.vmem [shape: f32[1,80], index: 8, kind: input, shape index: {}]
  %s9 = inlined_call_operand.vmem [shape: f32[80,10], index: 9, kind: input, shape index: {}]
  %s10 = inlined_call_operand.vmem [shape: f32[1,10], index: 10, kind: input, shape index: {}]
  %s11 = inlined_call_operand.vmem [shape: f32[10,4], index: 11, kind: input, shape index: {}]
  %s12 = inlined_call_operand.vmem [shape: f32[1,4], index: 12, kind: input, shape index: {}]
  %s13 = inlined_call_operand.vmem [shape: f32[64,4], index: 13, kind: output, shape index: {}]
  %s14 = sld [smem:[#allocation0]]
  $region62: #{tpu_custom_call.1} parent=0
    _
  %s16 = ssub.s32 1, %s14
  %s17 = scalar_select 0, %s16, %s14
  // Predicated region
  $region2: #{tpu_custom_call.1} parent=0 // pred_check
    _
  $region3: #{tpu_custom_call.1} parent=0 // pred_check_branch
    %19 = sbr.rel (0) target = $region5
  $region4: #{tpu_custom_call.1} parent=0 // pred_region
    _
  $region5: #{tpu_custom_call.1} parent=0 // pred_fallthru
    _
  // Predicated region
  $region6: #{tpu_custom_call.1} parent=0 // pred_check
    _
  $region7: #{tpu_custom_call.1} parent=0 // pred_check_branch
    %21 = sbr.rel (0) target = $region9
  $region8: #{tpu_custom_call.1} parent=0 // pred_region
    _
  $region9: #{tpu_custom_call.1} parent=0 // pred_fallthru
    _
  // Predicated region
  $region10: #{tpu_custom_call.1} parent=0 // pred_check
    _
  $region11: #{tpu_custom_call.1} parent=0 // pred_check_branch
    %23 = sbr.rel (0) target = $region13
  $region12: #{tpu_custom_call.1} parent=0 // pred_region
    _
  $region13: #{tpu_custom_call.1} parent=0 // pred_fallthru
    _
  // Predicated region
  $region14: #{tpu_custom_call.1} parent=0 // pred_check
    _
  $region15: #{tpu_custom_call.1} parent=0 // pred_check_branch
    %25 = sbr.rel (0) target = $region17
  $region16: #{tpu_custom_call.1} parent=0 // pred_region
    _
  $region17: #{tpu_custom_call.1} parent=0 // pred_fallthru
    _
  // Predicated region
  $region18: #{tpu_custom_call.1} parent=0 // pred_check
    _
  $region19: #{tpu_custom_call.1} parent=0 // pred_check_branch
    %27 = sbr.rel (0) target = $region21
  $region20: #{tpu_custom_call.1} parent=0 // pred_region
    _
  $region21: #{tpu_custom_call.1} parent=0 // pred_fallthru
    _
  // Predicated region
  $region22: #{tpu_custom_call.1} parent=0 // pred_check
    _
  $region23: #{tpu_custom_call.1} parent=0 // pred_check_branch
    %29 = sbr.rel (0) target = $region25
  $region24: #{tpu_custom_call.1} parent=0 // pred_region
    _
  $region25: #{tpu_custom_call.1} parent=0 // pred_fallthru
    _
  // Predicated region
  $region26: #{tpu_custom_call.1} parent=0 // pred_check
    _
  $region27: #{tpu_custom_call.1} parent=0 // pred_check_branch
    %31 = sbr.rel (0) target = $region29
  $region28: #{tpu_custom_call.1} parent=0 // pred_region
    _
  $region29: #{tpu_custom_call.1} parent=0 // pred_fallthru
    _
  // Predicated region
  $region30: #{tpu_custom_call.1} parent=0 // pred_check
    _
  $region31: #{tpu_custom_call.1} parent=0 // pred_check_branch
    %33 = sbr.rel (0) target = $region33
  $region32: #{tpu_custom_call.1} parent=0 // pred_region
    _
  $region33: #{tpu_custom_call.1} parent=0 // pred_fallthru
    _
  // Predicated region
  $region34: #{tpu_custom_call.1} parent=0 // pred_check
    _
  $region35: #{tpu_custom_call.1} parent=0 // pred_check_branch
    %35 = sbr.rel (0) target = $region37
  $region36: #{tpu_custom_call.1} parent=0 // pred_region
    _
  $region37: #{tpu_custom_call.1} parent=0 // pred_fallthru
    _
  // Predicated region
  $region38: #{tpu_custom_call.1} parent=0 // pred_check
    _
  $region39: #{tpu_custom_call.1} parent=0 // pred_check_branch
    %37 = sbr.rel (0) target = $region41
  $region40: #{tpu_custom_call.1} parent=0 // pred_region
    _
  $region41: #{tpu_custom_call.1} parent=0 // pred_fallthru
    _
  // Predicated region
  $region42: #{tpu_custom_call.1} parent=0 // pred_check
    _
  $region43: #{tpu_custom_call.1} parent=0 // pred_check_branch
    %39 = sbr.rel (0) target = $region45
  $region44: #{tpu_custom_call.1} parent=0 // pred_region
    _
  $region45: #{tpu_custom_call.1} parent=0 // pred_fallthru
    _
  // Predicated region
  $region46: #{tpu_custom_call.1} parent=0 // pred_check
    _
  $region47: #{tpu_custom_call.1} parent=0 // pred_check_branch
    %41 = sbr.rel (0) target = $region49
  $region48: #{tpu_custom_call.1} parent=0 // pred_region
    _
  $region49: #{tpu_custom_call.1} parent=0 // pred_fallthru
    _
  // Predicated region
  $region50: #{tpu_custom_call.1} parent=0 // pred_check
    _
  $region51: #{tpu_custom_call.1} parent=0 // pred_check_branch
    %43 = sbr.rel (0) target = $region53
  $region52: #{tpu_custom_call.1} parent=0 // pred_region
    _
  $region53: #{tpu_custom_call.1} parent=0 // pred_fallthru
    _
  %v44 = vld [vmem:[%s0] sm:$0xff]
  %v45 = vld [vmem:[%s0 + $0x8] sm:$0xff]
  %v46 = vld [vmem:[%s0 + $0x10] sm:$0xff]
  %v47 = vld [vmem:[%s0 + $0x18] sm:$0xff]
  %v48 = vld [vmem:[%s0 + $0x20] sm:$0xff]
  %v49 = vld [vmem:[%s0 + $0x28] sm:$0xff]
  %v50 = vld [vmem:[%s0 + $0x30] sm:$0xff]
  %v51 = vld [vmem:[%s0 + $0x38] sm:$0xff]
  %v52 = vld [vmem:[%s1] sm:$0xff]
  %v53 = vld [vmem:[%s1 + $0x8] sm:$0xff]
  %v54 = vld [vmem:[%s2] sm:$0xff]
  %v55 = vld [vmem:[%s2 + $0x8] sm:$0xff]
  %v56 = vld [vmem:[%s2 + $0x10] sm:$0xff]
  %v57 = vld [vmem:[%s2 + $0x18] sm:$0xff]
  %v58 = vld [vmem:[%s3] sm:$0x1]
  %v60 = vlaneseq
  %v61 = vshrl.u32 %v60, 7
  %v62 = vsub.s32 0, %v61
  %v63 = vrot.slane %v58, %v62
  %vm65 = vcmask 130048
  %v67 = vsel %vm65, %v44, 0
  %v70 = vsel %vm65, %v45, 0
  %v73 = vsel %vm65, %v46, 0
  %v76 = vsel %vm65, %v47, 0
  %v79 = vsel %vm65, %v48, 0
  %v82 = vsel %vm65, %v49, 0
  %v85 = vsel %vm65, %v50, 0
  %v88 = vsel %vm65, %v51, 0
  %90 = vmatprep.subr.mxu0 0.0
  %91 = vmatpush1.msra.mxu0 0.0
  %92 = vmatprep.subr.mxu0 0.0
  %93 = vmatpush1.msra.mxu0 0.0
  %94 = vmatprep.subr.mxu0 0.0
  %95 = vmatpush1.msra.mxu0 0.0
  %96 = vmatprep.subr.mxu0 0.0
  %97 = vmatpush1.msra.mxu0 0.0
  %98 = vmatprep.subr.mxu0 0.0
  %99 = vmatpush1.msra.mxu0 0.0
  %100 = vmatprep.subr.mxu0 0.0
  %101 = vmatpush1.msra.mxu0 0.0
  %102 = vmatprep.subr.mxu0 0.0
  %103 = vmatpush1.msra.mxu0 0.0
  %104 = vmatprep.subr.mxu0 0.0
  %105 = vmatpush1.msra.mxu0 0.0
  %106 = vmatprep.subr.mxu0 0.0
  %107 = vmatpush1.msra.mxu0 0.0
  %108 = vmatprep.subr.mxu0 0.0
  %109 = vmatpush1.msra.mxu0 0.0
  %110 = vmatprep.subr.mxu0 0.0
  %111 = vmatpush1.msra.mxu0 0.0
  %112 = vmatprep.subr.mxu0 0.0
  %113 = vmatpush1.msra.mxu0 0.0
  %114 = vmatprep.subr.mxu0 0.0
  %115 = vmatpush1.msra.mxu0 0.0
  %116 = vmatprep.subr.mxu0 0.0
  %117 = vmatpush1.msra.mxu0 0.0
  %118 = vmatprep.subr.mxu0 0.0
  %119 = vmatpush1.msra.mxu0 %v53
  %120 = vmatprep.subr.mxu0 0.0
  %121 = vmatpush1.msra.mxu0 %v52
  %122 = vmatprep.subr.mxu0 0.0
  %123 = vmatpush2.msra.mxu0 0.0
  %124 = vmatprep.subr.mxu0 0.0
  %125 = vmatpush2.msra.mxu0 0.0
  %126 = vmatprep.subr.mxu0 0.0
  %127 = vmatpush2.msra.mxu0 0.0
  %128 = vmatprep.subr.mxu0 0.0
  %129 = vmatpush2.msra.mxu0 0.0
  %130 = vmatprep.subr.mxu0 0.0
  %131 = vmatpush2.msra.mxu0 0.0
  %132 = vmatprep.subr.mxu0 0.0
  %133 = vmatpush2.msra.mxu0 0.0
  %134 = vmatprep.subr.mxu0 0.0
  %135 = vmatpush2.msra.mxu0 0.0
  %136 = vmatprep.subr.mxu0 0.0
  %137 = vmatpush2.msra.mxu0 0.0
  %138 = vmatprep.subr.mxu0 0.0
  %139 = vmatpush2.msra.mxu0 0.0
  %140 = vmatprep.subr.mxu0 0.0
  %141 = vmatpush2.msra.mxu0 0.0
  %142 = vmatprep.subr.mxu0 0.0
  %143 = vmatpush2.msra.mxu0 0.0
  %144 = vmatprep.subr.mxu0 0.0
  %145 = vmatpush2.msra.mxu0 0.0
  %146 = vmatprep.subr.mxu0 0.0
  %147 = vmatpush2.msra.mxu0 0.0
  %148 = vmatprep.subr.mxu0 0.0
  %149 = vmatpush2.msra.mxu0 0.0
  %150 = vmatprep.subr.mxu0 0.0
  %151 = vmatpush2.msra.mxu0 0.0
  %152 = vmatprep.subr.mxu0 0.0
  %153 = vmatpush2.msra.mxu0 0.0
  %154 = vmatprep.mubr.f32.mxu0 0.0
  %155 = vmatmul.mubr.f32.gmra.mxu0 %v67
  %v156 = vpop.f32.mrf.mxu0
  %v157 = vadd.f32 %v63, %v156
  %v158 = vpop.f32.mrf.mxu0
  %159 = vmatprep.mubr.f32.mxu0 0.0
  %160 = vmatmul.mubr.f32.gmra.mxu0 %v70
  %v161 = vpop.f32.mrf.mxu0
  %v162 = vadd.f32 %v63, %v161
  %v163 = vpop.f32.mrf.mxu0
  %164 = vmatprep.mubr.f32.mxu0 0.0
  %165 = vmatmul.mubr.f32.gmra.mxu0 %v73
  %v166 = vpop.f32.mrf.mxu0
  %v167 = vadd.f32 %v63, %v166
  %v168 = vpop.f32.mrf.mxu0
  %169 = vmatprep.mubr.f32.mxu0 0.0
  %170 = vmatmul.mubr.f32.gmra.mxu0 %v76
  %v171 = vpop.f32.mrf.mxu0
  %v172 = vadd.f32 %v63, %v171
  %v173 = vpop.f32.mrf.mxu0
  %174 = vmatprep.mubr.f32.mxu0 0.0
  %175 = vmatmul.mubr.f32.gmra.mxu0 %v79
  %v176 = vpop.f32.mrf.mxu0
  %v177 = vadd.f32 %v63, %v176
  %v178 = vpop.f32.mrf.mxu0
  %179 = vmatprep.mubr.f32.mxu0 0.0
  %180 = vmatmul.mubr.f32.gmra.mxu0 %v82
  %v181 = vpop.f32.mrf.mxu0
  %v182 = vadd.f32 %v63, %v181
  %v183 = vpop.f32.mrf.mxu0
  %184 = vmatprep.mubr.f32.mxu0 0.0
  %185 = vmatmul.mubr.f32.gmra.mxu0 %v85
  %v186 = vpop.f32.mrf.mxu0
  %v187 = vadd.f32 %v63, %v186
  %v188 = vpop.f32.mrf.mxu0
  %189 = vmatprep.mubr.f32.mxu0 0.0
  %190 = vmatmul.mubr.f32.gmra.mxu0 %v88
  %v191 = vpop.f32.mrf.mxu0
  %v192 = vadd.f32 %v63, %v191
  %v193 = vpop.f32.mrf.mxu0
  %194 = vdwg.mxu0
  %vm195 = vcmask 261120
  %v197 = vsel %vm195, 0.0, 0
  %199 = vmatprep.subr.mxu0 0.0
  %200 = vmatpush1.msra.mxu0 0.0
  %201 = vmatprep.subr.mxu0 0.0
  %202 = vmatpush1.msra.mxu0 0.0
  %203 = vmatprep.subr.mxu0 0.0
  %204 = vmatpush1.msra.mxu0 0.0
  %205 = vmatprep.subr.mxu0 0.0
  %206 = vmatpush1.msra.mxu0 0.0
  %207 = vmatprep.subr.mxu0 0.0
  %208 = vmatpush1.msra.mxu0 0.0
  %209 = vmatprep.subr.mxu0 0.0
  %210 = vmatpush1.msra.mxu0 0.0
  %211 = vmatprep.subr.mxu0 0.0
  %212 = vmatpush1.msra.mxu0 0.0
  %213 = vmatprep.subr.mxu0 0.0
  %214 = vmatpush1.msra.mxu0 0.0
  %215 = vmatprep.subr.mxu0 0.0
  %216 = vmatpush1.msra.mxu0 0.0
  %217 = vmatprep.subr.mxu0 0.0
  %218 = vmatpush1.msra.mxu0 0.0
  %219 = vmatprep.subr.mxu0 0.0
  %220 = vmatpush1.msra.mxu0 0.0
  %221 = vmatprep.subr.mxu0 0.0
  %222 = vmatpush1.msra.mxu0 0.0
  %223 = vmatprep.subr.mxu0 0.0
  %224 = vmatpush1.msra.mxu0 %v57
  %225 = vmatprep.subr.mxu0 0.0
  %226 = vmatpush1.msra.mxu0 %v56
  %227 = vmatprep.subr.mxu0 0.0
  %228 = vmatpush1.msra.mxu0 %v55
  %229 = vmatprep.subr.mxu0 0.0
  %230 = vmatpush1.msra.mxu0 %v54
  %231 = vmatprep.subr.mxu0 0.0
  %232 = vmatpush2.msra.mxu0 0.0
  %233 = vmatprep.subr.mxu0 0.0
  %234 = vmatpush2.msra.mxu0 0.0
  %235 = vmatprep.subr.mxu0 0.0
  %236 = vmatpush2.msra.mxu0 0.0
  %237 = vmatprep.subr.mxu0 0.0
  %238 = vmatpush2.msra.mxu0 0.0
  %239 = vmatprep.subr.mxu0 0.0
  %240 = vmatpush2.msra.mxu0 0.0
  %241 = vmatprep.subr.mxu0 0.0
  %242 = vmatpush2.msra.mxu0 0.0
  %243 = vmatprep.subr.mxu0 0.0
  %244 = vmatpush2.msra.mxu0 0.0
  %245 = vmatprep.subr.mxu0 0.0
  %246 = vmatpush2.msra.mxu0 0.0
  %247 = vmatprep.subr.mxu0 0.0
  %248 = vmatpush2.msra.mxu0 0.0
  %249 = vmatprep.subr.mxu0 0.0
  %250 = vmatpush2.msra.mxu0 0.0
  %251 = vmatprep.subr.mxu0 0.0
  %252 = vmatpush2.msra.mxu0 0.0
  %253 = vmatprep.subr.mxu0 0.0
  %254 = vmatpush2.msra.mxu0 0.0
  %255 = vmatprep.subr.mxu0 0.0
  %256 = vmatpush2.msra.mxu0 0.0
  %257 = vmatprep.subr.mxu0 0.0
  %258 = vmatpush2.msra.mxu0 0.0
  %259 = vmatprep.subr.mxu0 0.0
  %260 = vmatpush2.msra.mxu0 0.0
  %261 = vmatprep.subr.mxu0 0.0
  %262 = vmatpush2.msra.mxu0 0.0
  %263 = vmatprep.mubr.f32.mxu0 0.0
  %264 = vmatmul.mubr.f32.gmra.mxu0 %v197
  %v265 = vpop.f32.mrf.mxu0
  %v266 = vadd.f32 0.0, %v265
  %v267 = vpop.f32.mrf.mxu0
  %268 = vdwg.mxu0
  %v269 = vadd.f32 %v157, %v266
  %v270 = vxor.u32 %v269, 2147483648
  %v271 = vmul.f32 %v270, 1.442695
  %v272 = vpow.pop %v271
  %v273 = vadd.f32 %v272, 1.0
  %v274 = vrcp.pop %v273
  %v275 = vmul.f32 1.0, %v274
  %v276 = vtanh.pop %v269
  %v277 = vmul.f32 %v275, 0.0
  %279 = vrot.lane.b32.xlu0 %v276, 64
  %v280 = vpop.permute.xlu0 %279
  %v282 = vmul.f32 %v275, %v280
  %284 = vrot.lane.b32.xlu0 %v282, 32
  %v285 = vpop.permute.xlu0 %284
  %v287 = vadd.f32 %v277, %v285
  %v288 = vtanh.pop %v287
  %290 = vrot.lane.b32.xlu0 %v288, 64
  %v291 = vpop.permute.xlu0 %290
  %v293 = vmul.f32 %v275, %v291
  %295 = vrot.lane.b32.xlu0 %v293, 32
  %v296 = vpop.permute.xlu0 %295
  %v297 = vsel %vm195, %v296, 0
  %299 = vmatprep.subr.mxu0 0.0
  %300 = vmatpush1.msra.mxu0 0.0
  %301 = vmatprep.subr.mxu0 0.0
  %302 = vmatpush1.msra.mxu0 0.0
  %303 = vmatprep.subr.mxu0 0.0
  %304 = vmatpush1.msra.mxu0 0.0
  %305 = vmatprep.subr.mxu0 0.0
  %306 = vmatpush1.msra.mxu0 0.0
  %307 = vmatprep.subr.mxu0 0.0
  %308 = vmatpush1.msra.mxu0 0.0
  %309 = vmatprep.subr.mxu0 0.0
  %310 = vmatpush1.msra.mxu0 0.0
  %311 = vmatprep.subr.mxu0 0.0
  %312 = vmatpush1.msra.mxu0 0.0
  %313 = vmatprep.subr.mxu0 0.0
  %314 = vmatpush1.msra.mxu0 0.0
  %315 = vmatprep.subr.mxu0 0.0
  %316 = vmatpush1.msra.mxu0 0.0
  %317 = vmatprep.subr.mxu0 0.0
  %318 = vmatpush1.msra.mxu0 0.0
  %319 = vmatprep.subr.mxu0 0.0
  %320 = vmatpush1.msra.mxu0 0.0
  %321 = vmatprep.subr.mxu0 0.0
  %322 = vmatpush1.msra.mxu0 0.0
  %323 = vmatprep.subr.mxu0 0.0
  %324 = vmatpush1.msra.mxu0 %v57
  %325 = vmatprep.subr.mxu0 0.0
  %326 = vmatpush1.msra.mxu0 %v56
  %327 = vmatprep.subr.mxu0 0.0
  %328 = vmatpush1.msra.mxu0 %v55
  %329 = vmatprep.subr.mxu0 0.0
  %330 = vmatpush1.msra.mxu0 %v54
  %331 = vmatprep.subr.mxu0 0.0
  %332 = vmatpush2.msra.mxu0 0.0
  %333 = vmatprep.subr.mxu0 0.0
  %334 = vmatpush2.msra.mxu0 0.0
  %335 = vmatprep.subr.mxu0 0.0
  %336 = vmatpush2.msra.mxu0 0.0
  %337 = vmatprep.subr.mxu0 0.0
  %338 = vmatpush2.msra.mxu0 0.0
  %339 = vmatprep.subr.mxu0 0.0
  %340 = vmatpush2.msra.mxu0 0.0
  %341 = vmatprep.subr.mxu0 0.0
  %342 = vmatpush2.msra.mxu0 0.0
  %343 = vmatprep.subr.mxu0 0.0
  %344 = vmatpush2.msra.mxu0 0.0
  %345 = vmatprep.subr.mxu0 0.0
  %346 = vmatpush2.msra.mxu0 0.0
  %347 = vmatprep.subr.mxu0 0.0
  %348 = vmatpush2.msra.mxu0 0.0
  %349 = vmatprep.subr.mxu0 0.0
  %350 = vmatpush2.msra.mxu0 0.0
  %351 = vmatprep.subr.mxu0 0.0
  %352 = vmatpush2.msra.mxu0 0.0
  %353 = vmatprep.subr.mxu0 0.0
  %354 = vmatpush2.msra.mxu0 0.0
  %355 = vmatprep.subr.mxu0 0.0
  %356 = vmatpush2.msra.mxu0 0.0
  %357 = vmatprep.subr.mxu0 0.0
  %358 = vmatpush2.msra.mxu0 0.0
  %359 = vmatprep.subr.mxu0 0.0
  %360 = vmatpush2.msra.mxu0 0.0
  %361 = vmatprep.subr.mxu0 0.0
  %362 = vmatpush2.msra.mxu0 0.0
  %363 = vmatprep.mubr.f32.mxu0 0.0
  %364 = vmatmul.mubr.f32.gmra.mxu0 %v297
  %v365 = vpop.f32.mrf.mxu0
  %v366 = vadd.f32 0.0, %v365
  %v367 = vpop.f32.mrf.mxu0
  %368 = vdwg.mxu0
  %v369 = vadd.f32 %v162, %v366
  %v370 = vxor.u32 %v369, 2147483648
  %v371 = vmul.f32 %v370, 1.442695
  %v372 = vpow.pop %v371
  %v373 = vadd.f32 %v372, 1.0
  %v374 = vrcp.pop %v373
  %v375 = vmul.f32 1.0, %v374
  %v376 = vtanh.pop %v369
  %v377 = vmul.f32 %v375, %v287
  %379 = vrot.lane.b32.xlu0 %v376, 64
  %v380 = vpop.permute.xlu0 %379
  %v382 = vmul.f32 %v375, %v380
  %384 = vrot.lane.b32.xlu0 %v382, 32
  %v385 = vpop.permute.xlu0 %384
  %v387 = vadd.f32 %v377, %v385
  %v388 = vtanh.pop %v387
  %390 = vrot.lane.b32.xlu0 %v388, 64
  %v391 = vpop.permute.xlu0 %390
  %v393 = vmul.f32 %v375, %v391
  %395 = vrot.lane.b32.xlu0 %v393, 32
  %v396 = vpop.permute.xlu0 %395
  %v397 = vsel %vm195, %v396, 0
  %399 = vmatprep.subr.mxu0 0.0
  %400 = vmatpush1.msra.mxu0 0.0
  %401 = vmatprep.subr.mxu0 0.0
  %402 = vmatpush1.msra.mxu0 0.0
  %403 = vmatprep.subr.mxu0 0.0
  %404 = vmatpush1.msra.mxu0 0.0
  %405 = vmatprep.subr.mxu0 0.0
  %406 = vmatpush1.msra.mxu0 0.0
  %407 = vmatprep.subr.mxu0 0.0
  %408 = vmatpush1.msra.mxu0 0.0
  %409 = vmatprep.subr.mxu0 0.0
  %410 = vmatpush1.msra.mxu0 0.0
  %411 = vmatprep.subr.mxu0 0.0
  %412 = vmatpush1.msra.mxu0 0.0
  %413 = vmatprep.subr.mxu0 0.0
  %414 = vmatpush1.msra.mxu0 0.0
  %415 = vmatprep.subr.mxu0 0.0
  %416 = vmatpush1.msra.mxu0 0.0
  %417 = vmatprep.subr.mxu0 0.0
  %418 = vmatpush1.msra.mxu0 0.0
  %419 = vmatprep.subr.mxu0 0.0
  %420 = vmatpush1.msra.mxu0 0.0
  %421 = vmatprep.subr.mxu0 0.0
  %422 = vmatpush1.msra.mxu0 0.0
  %423 = vmatprep.subr.mxu0 0.0
  %424 = vmatpush1.msra.mxu0 %v57
  %425 = vmatprep.subr.mxu0 0.0
  %426 = vmatpush1.msra.mxu0 %v56
  %427 = vmatprep.subr.mxu0 0.0
  %428 = vmatpush1.msra.mxu0 %v55
  %429 = vmatprep.subr.mxu0 0.0
  %430 = vmatpush1.msra.mxu0 %v54
  %431 = vmatprep.subr.mxu0 0.0
  %432 = vmatpush2.msra.mxu0 0.0
  %433 = vmatprep.subr.mxu0 0.0
  %434 = vmatpush2.msra.mxu0 0.0
  %435 = vmatprep.subr.mxu0 0.0
  %436 = vmatpush2.msra.mxu0 0.0
  %437 = vmatprep.subr.mxu0 0.0
  %438 = vmatpush2.msra.mxu0 0.0
  %439 = vmatprep.subr.mxu0 0.0
  %440 = vmatpush2.msra.mxu0 0.0
  %441 = vmatprep.subr.mxu0 0.0
  %442 = vmatpush2.msra.mxu0 0.0
  %443 = vmatprep.subr.mxu0 0.0
  %444 = vmatpush2.msra.mxu0 0.0
  %445 = vmatprep.subr.mxu0 0.0
  %446 = vmatpush2.msra.mxu0 0.0
  %447 = vmatprep.subr.mxu0 0.0
  %448 = vmatpush2.msra.mxu0 0.0
  %449 = vmatprep.subr.mxu0 0.0
  %450 = vmatpush2.msra.mxu0 0.0
  %451 = vmatprep.subr.mxu0 0.0
  %452 = vmatpush2.msra.mxu0 0.0
  %453 = vmatprep.subr.mxu0 0.0
  %454 = vmatpush2.msra.mxu0 0.0
  %455 = vmatprep.subr.mxu0 0.0
  %456 = vmatpush2.msra.mxu0 0.0
  %457 = vmatprep.subr.mxu0 0.0
  %458 = vmatpush2.msra.mxu0 0.0
  %459 = vmatprep.subr.mxu0 0.0
  %460 = vmatpush2.msra.mxu0 0.0
  %461 = vmatprep.subr.mxu0 0.0
  %462 = vmatpush2.msra.mxu0 0.0
  %463 = vmatprep.mubr.f32.mxu0 0.0
  %464 = vmatmul.mubr.f32.gmra.mxu0 %v397
  %v465 = vpop.f32.mrf.mxu0
  %v466 = vadd.f32 0.0, %v465
  %v467 = vpop.f32.mrf.mxu0
  %468 = vdwg.mxu0
  %v469 = vadd.f32 %v167, %v466
  %v470 = vxor.u32 %v469, 2147483648
  %v471 = vmul.f32 %v470, 1.442695
  %v472 = vpow.pop %v471
  %v473 = vadd.f32 %v472, 1.0
  %v474 = vrcp.pop %v473
  %v475 = vmul.f32 1.0, %v474
  %v476 = vtanh.pop %v469
  %v477 = vmul.f32 %v475, %v387
  %479 = vrot.lane.b32.xlu0 %v476, 64
  %v480 = vpop.permute.xlu0 %479
  %v482 = vmul.f32 %v475, %v480
  %484 = vrot.lane.b32.xlu0 %v482, 32
  %v485 = vpop.permute.xlu0 %484
  %v487 = vadd.f32 %v477, %v485
  %v488 = vtanh.pop %v487
  %490 = vrot.lane.b32.xlu0 %v488, 64
  %v491 = vpop.permute.xlu0 %490
  %v493 = vmul.f32 %v475, %v491
  %495 = vrot.lane.b32.xlu0 %v493, 32
  %v496 = vpop.permute.xlu0 %495
  %v497 = vsel %vm195, %v496, 0
  %499 = vmatprep.subr.mxu0 0.0
  %500 = vmatpush1.msra.mxu0 0.0
  %501 = vmatprep.subr.mxu0 0.0
  %502 = vmatpush1.msra.mxu0 0.0
  %503 = vmatprep.subr.mxu0 0.0
  %504 = vmatpush1.msra.mxu0 0.0
  %505 = vmatprep.subr.mxu0 0.0
  %506 = vmatpush1.msra.mxu0 0.0
  %507 = vmatprep.subr.mxu0 0.0
  %508 = vmatpush1.msra.mxu0 0.0
  %509 = vmatprep.subr.mxu0 0.0
  %510 = vmatpush1.msra.mxu0 0.0
  %511 = vmatprep.subr.mxu0 0.0
  %512 = vmatpush1.msra.mxu0 0.0
  %513 = vmatprep.subr.mxu0 0.0
  %514 = vmatpush1.msra.mxu0 0.0
  %515 = vmatprep.subr.mxu0 0.0
  %516 = vmatpush1.msra.mxu0 0.0
  %517 = vmatprep.subr.mxu0 0.0
  %518 = vmatpush1.msra.mxu0 0.0
  %519 = vmatprep.subr.mxu0 0.0
  %520 = vmatpush1.msra.mxu0 0.0
  %521 = vmatprep.subr.mxu0 0.0
  %522 = vmatpush1.msra.mxu0 0.0
  %523 = vmatprep.subr.mxu0 0.0
  %524 = vmatpush1.msra.mxu0 %v57
  %525 = vmatprep.subr.mxu0 0.0
  %526 = vmatpush1.msra.mxu0 %v56
  %527 = vmatprep.subr.mxu0 0.0
  %528 = vmatpush1.msra.mxu0 %v55
  %529 = vmatprep.subr.mxu0 0.0
  %530 = vmatpush1.msra.mxu0 %v54
  %531 = vmatprep.subr.mxu0 0.0
  %532 = vmatpush2.msra.mxu0 0.0
  %533 = vmatprep.subr.mxu0 0.0
  %534 = vmatpush2.msra.mxu0 0.0
  %535 = vmatprep.subr.mxu0 0.0
  %536 = vmatpush2.msra.mxu0 0.0
  %537 = vmatprep.subr.mxu0 0.0
  %538 = vmatpush2.msra.mxu0 0.0
  %539 = vmatprep.subr.mxu0 0.0
  %540 = vmatpush2.msra.mxu0 0.0
  %541 = vmatprep.subr.mxu0 0.0
  %542 = vmatpush2.msra.mxu0 0.0
  %543 = vmatprep.subr.mxu0 0.0
  %544 = vmatpush2.msra.mxu0 0.0
  %545 = vmatprep.subr.mxu0 0.0
  %546 = vmatpush2.msra.mxu0 0.0
  %547 = vmatprep.subr.mxu0 0.0
  %548 = vmatpush2.msra.mxu0 0.0
  %549 = vmatprep.subr.mxu0 0.0
  %550 = vmatpush2.msra.mxu0 0.0
  %551 = vmatprep.subr.mxu0 0.0
  %552 = vmatpush2.msra.mxu0 0.0
  %553 = vmatprep.subr.mxu0 0.0
  %554 = vmatpush2.msra.mxu0 0.0
  %555 = vmatprep.subr.mxu0 0.0
  %556 = vmatpush2.msra.mxu0 0.0
  %557 = vmatprep.subr.mxu0 0.0
  %558 = vmatpush2.msra.mxu0 0.0
  %559 = vmatprep.subr.mxu0 0.0
  %560 = vmatpush2.msra.mxu0 0.0
  %561 = vmatprep.subr.mxu0 0.0
  %562 = vmatpush2.msra.mxu0 0.0
  %563 = vmatprep.mubr.f32.mxu0 0.0
  %564 = vmatmul.mubr.f32.gmra.mxu0 %v497
  %v565 = vpop.f32.mrf.mxu0
  %v566 = vadd.f32 0.0, %v565
  %v567 = vpop.f32.mrf.mxu0
  %568 = vdwg.mxu0
  %v569 = vadd.f32 %v172, %v566
  %v570 = vxor.u32 %v569, 2147483648
  %v571 = vmul.f32 %v570, 1.442695
  %v572 = vpow.pop %v571
  %v573 = vadd.f32 %v572, 1.0
  %v574 = vrcp.pop %v573
  %v575 = vmul.f32 1.0, %v574
  %v576 = vtanh.pop %v569
  %v577 = vmul.f32 %v575, %v487
  %579 = vrot.lane.b32.xlu0 %v576, 64
  %v580 = vpop.permute.xlu0 %579
  %v582 = vmul.f32 %v575, %v580
  %584 = vrot.lane.b32.xlu0 %v582, 32
  %v585 = vpop.permute.xlu0 %584
  %v587 = vadd.f32 %v577, %v585
  %v588 = vtanh.pop %v587
  %590 = vrot.lane.b32.xlu0 %v588, 64
  %v591 = vpop.permute.xlu0 %590
  %v593 = vmul.f32 %v575, %v591
  %595 = vrot.lane.b32.xlu0 %v593, 32
  %v596 = vpop.permute.xlu0 %595
  %v597 = vsel %vm195, %v596, 0
  %599 = vmatprep.subr.mxu0 0.0
  %600 = vmatpush1.msra.mxu0 0.0
  %601 = vmatprep.subr.mxu0 0.0
  %602 = vmatpush1.msra.mxu0 0.0
  %603 = vmatprep.subr.mxu0 0.0
  %604 = vmatpush1.msra.mxu0 0.0
  %605 = vmatprep.subr.mxu0 0.0
  %606 = vmatpush1.msra.mxu0 0.0
  %607 = vmatprep.subr.mxu0 0.0
  %608 = vmatpush1.msra.mxu0 0.0
  %609 = vmatprep.subr.mxu0 0.0
  %610 = vmatpush1.msra.mxu0 0.0
  %611 = vmatprep.subr.mxu0 0.0
  %612 = vmatpush1.msra.mxu0 0.0
  %613 = vmatprep.subr.mxu0 0.0
  %614 = vmatpush1.msra.mxu0 0.0
  %615 = vmatprep.subr.mxu0 0.0
  %616 = vmatpush1.msra.mxu0 0.0
  %617 = vmatprep.subr.mxu0 0.0
  %618 = vmatpush1.msra.mxu0 0.0
  %619 = vmatprep.subr.mxu0 0.0
  %620 = vmatpush1.msra.mxu0 0.0
  %621 = vmatprep.subr.mxu0 0.0
  %622 = vmatpush1.msra.mxu0 0.0
  %623 = vmatprep.subr.mxu0 0.0
  %624 = vmatpush1.msra.mxu0 %v57
  %625 = vmatprep.subr.mxu0 0.0
  %626 = vmatpush1.msra.mxu0 %v56
  %627 = vmatprep.subr.mxu0 0.0
  %628 = vmatpush1.msra.mxu0 %v55
  %629 = vmatprep.subr.mxu0 0.0
  %630 = vmatpush1.msra.mxu0 %v54
  %631 = vmatprep.subr.mxu0 0.0
  %632 = vmatpush2.msra.mxu0 0.0
  %633 = vmatprep.subr.mxu0 0.0
  %634 = vmatpush2.msra.mxu0 0.0
  %635 = vmatprep.subr.mxu0 0.0
  %636 = vmatpush2.msra.mxu0 0.0
  %637 = vmatprep.subr.mxu0 0.0
  %638 = vmatpush2.msra.mxu0 0.0
  %639 = vmatprep.subr.mxu0 0.0
  %640 = vmatpush2.msra.mxu0 0.0
  %641 = vmatprep.subr.mxu0 0.0
  %642 = vmatpush2.msra.mxu0 0.0
  %643 = vmatprep.subr.mxu0 0.0
  %644 = vmatpush2.msra.mxu0 0.0
  %645 = vmatprep.subr.mxu0 0.0
  %646 = vmatpush2.msra.mxu0 0.0
  %647 = vmatprep.subr.mxu0 0.0
  %648 = vmatpush2.msra.mxu0 0.0
  %649 = vmatprep.subr.mxu0 0.0
  %650 = vmatpush2.msra.mxu0 0.0
  %651 = vmatprep.subr.mxu0 0.0
  %652 = vmatpush2.msra.mxu0 0.0
  %653 = vmatprep.subr.mxu0 0.0
  %654 = vmatpush2.msra.mxu0 0.0
  %655 = vmatprep.subr.mxu0 0.0
  %656 = vmatpush2.msra.mxu0 0.0
  %657 = vmatprep.subr.mxu0 0.0
  %658 = vmatpush2.msra.mxu0 0.0
  %659 = vmatprep.subr.mxu0 0.0
  %660 = vmatpush2.msra.mxu0 0.0
  %661 = vmatprep.subr.mxu0 0.0
  %662 = vmatpush2.msra.mxu0 0.0
  %663 = vmatprep.mubr.f32.mxu0 0.0
  %664 = vmatmul.mubr.f32.gmra.mxu0 %v597
  %v665 = vpop.f32.mrf.mxu0
  %v666 = vadd.f32 0.0, %v665
  %v667 = vpop.f32.mrf.mxu0
  %668 = vdwg.mxu0
  %v669 = vadd.f32 %v177, %v666
  %v670 = vxor.u32 %v669, 2147483648
  %v671 = vmul.f32 %v670, 1.442695
  %v672 = vpow.pop %v671
  %v673 = vadd.f32 %v672, 1.0
  %v674 = vrcp.pop %v673
  %v675 = vmul.f32 1.0, %v674
  %v676 = vtanh.pop %v669
  %v677 = vmul.f32 %v675, %v587
  %679 = vrot.lane.b32.xlu0 %v676, 64
  %v680 = vpop.permute.xlu0 %679
  %v682 = vmul.f32 %v675, %v680
  %684 = vrot.lane.b32.xlu0 %v682, 32
  %v685 = vpop.permute.xlu0 %684
  %v687 = vadd.f32 %v677, %v685
  %v688 = vtanh.pop %v687
  %690 = vrot.lane.b32.xlu0 %v688, 64
  %v691 = vpop.permute.xlu0 %690
  %v693 = vmul.f32 %v675, %v691
  %695 = vrot.lane.b32.xlu0 %v693, 32
  %v696 = vpop.permute.xlu0 %695
  %v697 = vsel %vm195, %v696, 0
  %699 = vmatprep.subr.mxu0 0.0
  %700 = vmatpush1.msra.mxu0 0.0
  %701 = vmatprep.subr.mxu0 0.0
  %702 = vmatpush1.msra.mxu0 0.0
  %703 = vmatprep.subr.mxu0 0.0
  %704 = vmatpush1.msra.mxu0 0.0
  %705 = vmatprep.subr.mxu0 0.0
  %706 = vmatpush1.msra.mxu0 0.0
  %707 = vmatprep.subr.mxu0 0.0
  %708 = vmatpush1.msra.mxu0 0.0
  %709 = vmatprep.subr.mxu0 0.0
  %710 = vmatpush1.msra.mxu0 0.0
  %711 = vmatprep.subr.mxu0 0.0
  %712 = vmatpush1.msra.mxu0 0.0
  %713 = vmatprep.subr.mxu0 0.0
  %714 = vmatpush1.msra.mxu0 0.0
  %715 = vmatprep.subr.mxu0 0.0
  %716 = vmatpush1.msra.mxu0 0.0
  %717 = vmatprep.subr.mxu0 0.0
  %718 = vmatpush1.msra.mxu0 0.0
  %719 = vmatprep.subr.mxu0 0.0
  %720 = vmatpush1.msra.mxu0 0.0
  %721 = vmatprep.subr.mxu0 0.0
  %722 = vmatpush1.msra.mxu0 0.0
  %723 = vmatprep.subr.mxu0 0.0
  %724 = vmatpush1.msra.mxu0 %v57
  %725 = vmatprep.subr.mxu0 0.0
  %726 = vmatpush1.msra.mxu0 %v56
  %727 = vmatprep.subr.mxu0 0.0
  %728 = vmatpush1.msra.mxu0 %v55
  %729 = vmatprep.subr.mxu0 0.0
  %730 = vmatpush1.msra.mxu0 %v54
  %731 = vmatprep.subr.mxu0 0.0
  %732 = vmatpush2.msra.mxu0 0.0
  %733 = vmatprep.subr.mxu0 0.0
  %734 = vmatpush2.msra.mxu0 0.0
  %735 = vmatprep.subr.mxu0 0.0
  %736 = vmatpush2.msra.mxu0 0.0
  %737 = vmatprep.subr.mxu0 0.0
  %738 = vmatpush2.msra.mxu0 0.0
  %739 = vmatprep.subr.mxu0 0.0
  %740 = vmatpush2.msra.mxu0 0.0
  %741 = vmatprep.subr.mxu0 0.0
  %742 = vmatpush2.msra.mxu0 0.0
  %743 = vmatprep.subr.mxu0 0.0
  %744 = vmatpush2.msra.mxu0 0.0
  %745 = vmatprep.subr.mxu0 0.0
  %746 = vmatpush2.msra.mxu0 0.0
  %747 = vmatprep.subr.mxu0 0.0
  %748 = vmatpush2.msra.mxu0 0.0
  %749 = vmatprep.subr.mxu0 0.0
  %750 = vmatpush2.msra.mxu0 0.0
  %751 = vmatprep.subr.mxu0 0.0
  %752 = vmatpush2.msra.mxu0 0.0
  %753 = vmatprep.subr.mxu0 0.0
  %754 = vmatpush2.msra.mxu0 0.0
  %755 = vmatprep.subr.mxu0 0.0
  %756 = vmatpush2.msra.mxu0 0.0
  %757 = vmatprep.subr.mxu0 0.0
  %758 = vmatpush2.msra.mxu0 0.0
  %759 = vmatprep.subr.mxu0 0.0
  %760 = vmatpush2.msra.mxu0 0.0
  %761 = vmatprep.subr.mxu0 0.0
  %762 = vmatpush2.msra.mxu0 0.0
  %763 = vmatprep.mubr.f32.mxu0 0.0
  %764 = vmatmul.mubr.f32.gmra.mxu0 %v697
  %v765 = vpop.f32.mrf.mxu0
  %v766 = vadd.f32 0.0, %v765
  %v767 = vpop.f32.mrf.mxu0
  %768 = vdwg.mxu0
  %v769 = vadd.f32 %v182, %v766
  %v770 = vxor.u32 %v769, 2147483648
  %v771 = vmul.f32 %v770, 1.442695
  %v772 = vpow.pop %v771
  %v773 = vadd.f32 %v772, 1.0
  %v774 = vrcp.pop %v773
  %v775 = vmul.f32 1.0, %v774
  %v776 = vtanh.pop %v769
  %v777 = vmul.f32 %v775, %v687
  %779 = vrot.lane.b32.xlu0 %v776, 64
  %v780 = vpop.permute.xlu0 %779
  %v782 = vmul.f32 %v775, %v780
  %784 = vrot.lane.b32.xlu0 %v782, 32
  %v785 = vpop.permute.xlu0 %784
  %v787 = vadd.f32 %v777, %v785
  %v788 = vtanh.pop %v787
  %790 = vrot.lane.b32.xlu0 %v788, 64
  %v791 = vpop.permute.xlu0 %790
  %v793 = vmul.f32 %v775, %v791
  %795 = vrot.lane.b32.xlu0 %v793, 32
  %v796 = vpop.permute.xlu0 %795
  %v797 = vsel %vm195, %v796, 0
  %799 = vmatprep.subr.mxu0 0.0
  %800 = vmatpush1.msra.mxu0 0.0
  %801 = vmatprep.subr.mxu0 0.0
  %802 = vmatpush1.msra.mxu0 0.0
  %803 = vmatprep.subr.mxu0 0.0
  %804 = vmatpush1.msra.mxu0 0.0
  %805 = vmatprep.subr.mxu0 0.0
  %806 = vmatpush1.msra.mxu0 0.0
  %807 = vmatprep.subr.mxu0 0.0
  %808 = vmatpush1.msra.mxu0 0.0
  %809 = vmatprep.subr.mxu0 0.0
  %810 = vmatpush1.msra.mxu0 0.0
  %811 = vmatprep.subr.mxu0 0.0
  %812 = vmatpush1.msra.mxu0 0.0
  %813 = vmatprep.subr.mxu0 0.0
  %814 = vmatpush1.msra.mxu0 0.0
  %815 = vmatprep.subr.mxu0 0.0
  %816 = vmatpush1.msra.mxu0 0.0
  %817 = vmatprep.subr.mxu0 0.0
  %818 = vmatpush1.msra.mxu0 0.0
  %819 = vmatprep.subr.mxu0 0.0
  %820 = vmatpush1.msra.mxu0 0.0
  %821 = vmatprep.subr.mxu0 0.0
  %822 = vmatpush1.msra.mxu0 0.0
  %823 = vmatprep.subr.mxu0 0.0
  %824 = vmatpush1.msra.mxu0 %v57
  %825 = vmatprep.subr.mxu0 0.0
  %826 = vmatpush1.msra.mxu0 %v56
  %827 = vmatprep.subr.mxu0 0.0
  %828 = vmatpush1.msra.mxu0 %v55
  %829 = vmatprep.subr.mxu0 0.0
  %830 = vmatpush1.msra.mxu0 %v54
  %831 = vmatprep.subr.mxu0 0.0
  %832 = vmatpush2.msra.mxu0 0.0
  %833 = vmatprep.subr.mxu0 0.0
  %834 = vmatpush2.msra.mxu0 0.0
  %835 = vmatprep.subr.mxu0 0.0
  %836 = vmatpush2.msra.mxu0 0.0
  %837 = vmatprep.subr.mxu0 0.0
  %838 = vmatpush2.msra.mxu0 0.0
  %839 = vmatprep.subr.mxu0 0.0
  %840 = vmatpush2.msra.mxu0 0.0
  %841 = vmatprep.subr.mxu0 0.0
  %842 = vmatpush2.msra.mxu0 0.0
  %843 = vmatprep.subr.mxu0 0.0
  %844 = vmatpush2.msra.mxu0 0.0
  %845 = vmatprep.subr.mxu0 0.0
  %846 = vmatpush2.msra.mxu0 0.0
  %847 = vmatprep.subr.mxu0 0.0
  %848 = vmatpush2.msra.mxu0 0.0
  %849 = vmatprep.subr.mxu0 0.0
  %850 = vmatpush2.msra.mxu0 0.0
  %851 = vmatprep.subr.mxu0 0.0
  %852 = vmatpush2.msra.mxu0 0.0
  %853 = vmatprep.subr.mxu0 0.0
  %854 = vmatpush2.msra.mxu0 0.0
  %855 = vmatprep.subr.mxu0 0.0
  %856 = vmatpush2.msra.mxu0 0.0
  %857 = vmatprep.subr.mxu0 0.0
  %858 = vmatpush2.msra.mxu0 0.0
  %859 = vmatprep.subr.mxu0 0.0
  %860 = vmatpush2.msra.mxu0 0.0
  %861 = vmatprep.subr.mxu0 0.0
  %862 = vmatpush2.msra.mxu0 0.0
  %863 = vmatprep.mubr.f32.mxu0 0.0
  %864 = vmatmul.mubr.f32.gmra.mxu0 %v797
  %v865 = vpop.f32.mrf.mxu0
  %v866 = vadd.f32 0.0, %v865
  %v867 = vpop.f32.mrf.mxu0
  %868 = vdwg.mxu0
  %v869 = vadd.f32 %v187, %v866
  %v870 = vxor.u32 %v869, 2147483648
  %v871 = vmul.f32 %v870, 1.442695
  %v872 = vpow.pop %v871
  %v873 = vadd.f32 %v872, 1.0
  %v874 = vrcp.pop %v873
  %v875 = vmul.f32 1.0, %v874
  %v876 = vtanh.pop %v869
  %v877 = vmul.f32 %v875, %v787
  %879 = vrot.lane.b32.xlu0 %v876, 64
  %v880 = vpop.permute.xlu0 %879
  %v882 = vmul.f32 %v875, %v880
  %884 = vrot.lane.b32.xlu0 %v882, 32
  %v885 = vpop.permute.xlu0 %884
  %v887 = vadd.f32 %v877, %v885
  %v888 = vtanh.pop %v887
  %890 = vrot.lane.b32.xlu0 %v888, 64
  %v891 = vpop.permute.xlu0 %890
  %v893 = vmul.f32 %v875, %v891
  %895 = vrot.lane.b32.xlu0 %v893, 32
  %v896 = vpop.permute.xlu0 %895
  %v897 = vsel %vm195, %v896, 0
  %899 = vmatprep.subr.mxu0 0.0
  %900 = vmatpush1.msra.mxu0 0.0
  %901 = vmatprep.subr.mxu0 0.0
  %902 = vmatpush1.msra.mxu0 0.0
  %903 = vmatprep.subr.mxu0 0.0
  %904 = vmatpush1.msra.mxu0 0.0
  %905 = vmatprep.subr.mxu0 0.0
  %906 = vmatpush1.msra.mxu0 0.0
  %907 = vmatprep.subr.mxu0 0.0
  %908 = vmatpush1.msra.mxu0 0.0
  %909 = vmatprep.subr.mxu0 0.0
  %910 = vmatpush1.msra.mxu0 0.0
  %911 = vmatprep.subr.mxu0 0.0
  %912 = vmatpush1.msra.mxu0 0.0
  %913 = vmatprep.subr.mxu0 0.0
  %914 = vmatpush1.msra.mxu0 0.0
  %915 = vmatprep.subr.mxu0 0.0
  %916 = vmatpush1.msra.mxu0 0.0
  %917 = vmatprep.subr.mxu0 0.0
  %918 = vmatpush1.msra.mxu0 0.0
  %919 = vmatprep.subr.mxu0 0.0
  %920 = vmatpush1.msra.mxu0 0.0
  %921 = vmatprep.subr.mxu0 0.0
  %922 = vmatpush1.msra.mxu0 0.0
  %923 = vmatprep.subr.mxu0 0.0
  %924 = vmatpush1.msra.mxu0 %v57
  %925 = vmatprep.subr.mxu0 0.0
  %926 = vmatpush1.msra.mxu0 %v56
  %927 = vmatprep.subr.mxu0 0.0
  %928 = vmatpush1.msra.mxu0 %v55
  %929 = vmatprep.subr.mxu0 0.0
  %930 = vmatpush1.msra.mxu0 %v54
  %931 = vmatprep.subr.mxu0 0.0
  %932 = vmatpush2.msra.mxu0 0.0
  %933 = vmatprep.subr.mxu0 0.0
  %934 = vmatpush2.msra.mxu0 0.0
  %935 = vmatprep.subr.mxu0 0.0
  %936 = vmatpush2.msra.mxu0 0.0
  %937 = vmatprep.subr.mxu0 0.0
  %938 = vmatpush2.msra.mxu0 0.0
  %939 = vmatprep.subr.mxu0 0.0
  %940 = vmatpush2.msra.mxu0 0.0
  %941 = vmatprep.subr.mxu0 0.0
  %942 = vmatpush2.msra.mxu0 0.0
  %943 = vmatprep.subr.mxu0 0.0
  %944 = vmatpush2.msra.mxu0 0.0
  %945 = vmatprep.subr.mxu0 0.0
  %946 = vmatpush2.msra.mxu0 0.0
  %947 = vmatprep.subr.mxu0 0.0
  %948 = vmatpush2.msra.mxu0 0.0
  %949 = vmatprep.subr.mxu0 0.0
  %950 = vmatpush2.msra.mxu0 0.0
  %951 = vmatprep.subr.mxu0 0.0
  %952 = vmatpush2.msra.mxu0 0.0
  %953 = vmatprep.subr.mxu0 0.0
  %954 = vmatpush2.msra.mxu0 0.0
  %955 = vmatprep.subr.mxu0 0.0
  %956 = vmatpush2.msra.mxu0 0.0
  %957 = vmatprep.subr.mxu0 0.0
  %958 = vmatpush2.msra.mxu0 0.0
  %959 = vmatprep.subr.mxu0 0.0
  %960 = vmatpush2.msra.mxu0 0.0
  %961 = vmatprep.subr.mxu0 0.0
  %962 = vmatpush2.msra.mxu0 0.0
  %963 = vmatprep.mubr.f32.mxu0 0.0
  %964 = vmatmul.mubr.f32.gmra.mxu0 %v897
  %v965 = vpop.f32.mrf.mxu0
  %v966 = vadd.f32 0.0, %v965
  %v967 = vpop.f32.mrf.mxu0
  %968 = vdwg.mxu0
  %v969 = vadd.f32 %v192, %v966
  %v970 = vxor.u32 %v969, 2147483648
  %v971 = vmul.f32 %v970, 1.442695
  %v972 = vpow.pop %v971
  %v973 = vadd.f32 %v972, 1.0
  %v974 = vrcp.pop %v973
  %v975 = vmul.f32 1.0, %v974
  %v976 = vtanh.pop %v969
  %v977 = vmul.f32 %v975, %v887
  %979 = vrot.lane.b32.xlu0 %v976, 64
  %v980 = vpop.permute.xlu0 %979
  %v982 = vmul.f32 %v975, %v980
  %984 = vrot.lane.b32.xlu0 %v982, 32
  %v985 = vpop.permute.xlu0 %984
  %v987 = vadd.f32 %v977, %v985
  %v988 = vtanh.pop %v987
  %990 = vrot.lane.b32.xlu0 %v988, 64
  %v991 = vpop.permute.xlu0 %990
  %v993 = vmul.f32 %v975, %v991
  %v994 = vld [vmem:[%s4] sm:$0xff]
  %v995 = vld [vmem:[%s4 + $0x8] sm:$0xff]
  %v996 = vld [vmem:[%s4 + $0x10] sm:$0xff]
  %v997 = vld [vmem:[%s4 + $0x18] sm:$0xff]
  %v998 = vld [vmem:[%s5] sm:$0xff]
  %v999 = vld [vmem:[%s5 + $0x8] sm:$0xff]
  %v1000 = vld [vmem:[%s5 + $0x10] sm:$0xff]
  %v1001 = vld [vmem:[%s5 + $0x18] sm:$0xff]
  %v1002 = vld [vmem:[%s6] sm:$0x1]
  %v1004 = vlaneseq
  %v1005 = vshrl.u32 %v1004, 7
  %v1006 = vsub.s32 0, %v1005
  %v1007 = vrot.slane %v1002, %v1006
  %1010 = vrot.lane.b32.xlu0 %v993, 32
  %v1011 = vpop.permute.xlu0 %1010
  %v1012 = vsel %vm195, %v1011, 0
  %1014 = vmatprep.subr.mxu0 0.0
  %1015 = vmatpush1.msra.mxu0 0.0
  %1016 = vmatprep.subr.mxu0 0.0
  %1017 = vmatpush1.msra.mxu0 0.0
  %1018 = vmatprep.subr.mxu0 0.0
  %1019 = vmatpush1.msra.mxu0 0.0
  %1020 = vmatprep.subr.mxu0 0.0
  %1021 = vmatpush1.msra.mxu0 0.0
  %1022 = vmatprep.subr.mxu0 0.0
  %1023 = vmatpush1.msra.mxu0 0.0
  %1024 = vmatprep.subr.mxu0 0.0
  %1025 = vmatpush1.msra.mxu0 0.0
  %1026 = vmatprep.subr.mxu0 0.0
  %1027 = vmatpush1.msra.mxu0 0.0
  %1028 = vmatprep.subr.mxu0 0.0
  %1029 = vmatpush1.msra.mxu0 0.0
  %1030 = vmatprep.subr.mxu0 0.0
  %1031 = vmatpush1.msra.mxu0 0.0
  %1032 = vmatprep.subr.mxu0 0.0
  %1033 = vmatpush1.msra.mxu0 0.0
  %1034 = vmatprep.subr.mxu0 0.0
  %1035 = vmatpush1.msra.mxu0 0.0
  %1036 = vmatprep.subr.mxu0 0.0
  %1037 = vmatpush1.msra.mxu0 0.0
  %1038 = vmatprep.subr.mxu0 0.0
  %1039 = vmatpush1.msra.mxu0 %v997
  %1040 = vmatprep.subr.mxu0 0.0
  %1041 = vmatpush1.msra.mxu0 %v996
  %1042 = vmatprep.subr.mxu0 0.0
  %1043 = vmatpush1.msra.mxu0 %v995
  %1044 = vmatprep.subr.mxu0 0.0
  %1045 = vmatpush1.msra.mxu0 %v994
  %1046 = vmatprep.subr.mxu0 0.0
  %1047 = vmatpush2.msra.mxu0 0.0
  %1048 = vmatprep.subr.mxu0 0.0
  %1049 = vmatpush2.msra.mxu0 0.0
  %1050 = vmatprep.subr.mxu0 0.0
  %1051 = vmatpush2.msra.mxu0 0.0
  %1052 = vmatprep.subr.mxu0 0.0
  %1053 = vmatpush2.msra.mxu0 0.0
  %1054 = vmatprep.subr.mxu0 0.0
  %1055 = vmatpush2.msra.mxu0 0.0
  %1056 = vmatprep.subr.mxu0 0.0
  %1057 = vmatpush2.msra.mxu0 0.0
  %1058 = vmatprep.subr.mxu0 0.0
  %1059 = vmatpush2.msra.mxu0 0.0
  %1060 = vmatprep.subr.mxu0 0.0
  %1061 = vmatpush2.msra.mxu0 0.0
  %1062 = vmatprep.subr.mxu0 0.0
  %1063 = vmatpush2.msra.mxu0 0.0
  %1064 = vmatprep.subr.mxu0 0.0
  %1065 = vmatpush2.msra.mxu0 0.0
  %1066 = vmatprep.subr.mxu0 0.0
  %1067 = vmatpush2.msra.mxu0 0.0
  %1068 = vmatprep.subr.mxu0 0.0
  %1069 = vmatpush2.msra.mxu0 0.0
  %1070 = vmatprep.subr.mxu0 0.0
  %1071 = vmatpush2.msra.mxu0 0.0
  %1072 = vmatprep.subr.mxu0 0.0
  %1073 = vmatpush2.msra.mxu0 0.0
  %1074 = vmatprep.subr.mxu0 0.0
  %1075 = vmatpush2.msra.mxu0 0.0
  %1076 = vmatprep.subr.mxu0 0.0
  %1077 = vmatpush2.msra.mxu0 0.0
  %1078 = vmatprep.mubr.f32.mxu0 0.0
  %1079 = vmatmul.mubr.f32.gmra.mxu0 %v297
  %v1080 = vpop.f32.mrf.mxu0
  %v1081 = vadd.f32 %v1007, %v1080
  %v1082 = vpop.f32.mrf.mxu0
  %1083 = vmatprep.mubr.f32.mxu0 0.0
  %1084 = vmatmul.mubr.f32.gmra.mxu0 %v397
  %v1085 = vpop.f32.mrf.mxu0
  %v1086 = vadd.f32 %v1007, %v1085
  %v1087 = vpop.f32.mrf.mxu0
  %1088 = vmatprep.mubr.f32.mxu0 0.0
  %1089 = vmatmul.mubr.f32.gmra.mxu0 %v497
  %v1090 = vpop.f32.mrf.mxu0
  %v1091 = vadd.f32 %v1007, %v1090
  %v1092 = vpop.f32.mrf.mxu0
  %1093 = vmatprep.mubr.f32.mxu0 0.0
  %1094 = vmatmul.mubr.f32.gmra.mxu0 %v597
  %v1095 = vpop.f32.mrf.mxu0
  %v1096 = vadd.f32 %v1007, %v1095
  %v1097 = vpop.f32.mrf.mxu0
  %1098 = vmatprep.mubr.f32.mxu0 0.0
  %1099 = vmatmul.mubr.f32.gmra.mxu0 %v697
  %v1100 = vpop.f32.mrf.mxu0
  %v1101 = vadd.f32 %v1007, %v1100
  %v1102 = vpop.f32.mrf.mxu0
  %1103 = vmatprep.mubr.f32.mxu0 0.0
  %1104 = vmatmul.mubr.f32.gmra.mxu0 %v797
  %v1105 = vpop.f32.mrf.mxu0
  %v1106 = vadd.f32 %v1007, %v1105
  %v1107 = vpop.f32.mrf.mxu0
  %1108 = vmatprep.mubr.f32.mxu0 0.0
  %1109 = vmatmul.mubr.f32.gmra.mxu0 %v897
  %v1110 = vpop.f32.mrf.mxu0
  %v1111 = vadd.f32 %v1007, %v1110
  %v1112 = vpop.f32.mrf.mxu0
  %1113 = vmatprep.mubr.f32.mxu0 0.0
  %1114 = vmatmul.mubr.f32.gmra.mxu0 %v1012
  %v1115 = vpop.f32.mrf.mxu0
  %v1116 = vadd.f32 %v1007, %v1115
  %v1117 = vpop.f32.mrf.mxu0
  %1118 = vdwg.mxu0
  %1119 = vmatprep.subr.mxu0 0.0
  %1120 = vmatpush1.msra.mxu0 0.0
  %1121 = vmatprep.subr.mxu0 0.0
  %1122 = vmatpush1.msra.mxu0 0.0
  %1123 = vmatprep.subr.mxu0 0.0
  %1124 = vmatpush1.msra.mxu0 0.0
  %1125 = vmatprep.subr.mxu0 0.0
  %1126 = vmatpush1.msra.mxu0 0.0
  %1127 = vmatprep.subr.mxu0 0.0
  %1128 = vmatpush1.msra.mxu0 0.0
  %1129 = vmatprep.subr.mxu0 0.0
  %1130 = vmatpush1.msra.mxu0 0.0
  %1131 = vmatprep.subr.mxu0 0.0
  %1132 = vmatpush1.msra.mxu0 0.0
  %1133 = vmatprep.subr.mxu0 0.0
  %1134 = vmatpush1.msra.mxu0 0.0
  %1135 = vmatprep.subr.mxu0 0.0
  %1136 = vmatpush1.msra.mxu0 0.0
  %1137 = vmatprep.subr.mxu0 0.0
  %1138 = vmatpush1.msra.mxu0 0.0
  %1139 = vmatprep.subr.mxu0 0.0
  %1140 = vmatpush1.msra.mxu0 0.0
  %1141 = vmatprep.subr.mxu0 0.0
  %1142 = vmatpush1.msra.mxu0 0.0
  %1143 = vmatprep.subr.mxu0 0.0
  %1144 = vmatpush1.msra.mxu0 %v1001
  %1145 = vmatprep.subr.mxu0 0.0
  %1146 = vmatpush1.msra.mxu0 %v1000
  %1147 = vmatprep.subr.mxu0 0.0
  %1148 = vmatpush1.msra.mxu0 %v999
  %1149 = vmatprep.subr.mxu0 0.0
  %1150 = vmatpush1.msra.mxu0 %v998
  %1151 = vmatprep.subr.mxu0 0.0
  %1152 = vmatpush2.msra.mxu0 0.0
  %1153 = vmatprep.subr.mxu0 0.0
  %1154 = vmatpush2.msra.mxu0 0.0
  %1155 = vmatprep.subr.mxu0 0.0
  %1156 = vmatpush2.msra.mxu0 0.0
  %1157 = vmatprep.subr.mxu0 0.0
  %1158 = vmatpush2.msra.mxu0 0.0
  %1159 = vmatprep.subr.mxu0 0.0
  %1160 = vmatpush2.msra.mxu0 0.0
  %1161 = vmatprep.subr.mxu0 0.0
  %1162 = vmatpush2.msra.mxu0 0.0
  %1163 = vmatprep.subr.mxu0 0.0
  %1164 = vmatpush2.msra.mxu0 0.0
  %1165 = vmatprep.subr.mxu0 0.0
  %1166 = vmatpush2.msra.mxu0 0.0
  %1167 = vmatprep.subr.mxu0 0.0
  %1168 = vmatpush2.msra.mxu0 0.0
  %1169 = vmatprep.subr.mxu0 0.0
  %1170 = vmatpush2.msra.mxu0 0.0
  %1171 = vmatprep.subr.mxu0 0.0
  %1172 = vmatpush2.msra.mxu0 0.0
  %1173 = vmatprep.subr.mxu0 0.0
  %1174 = vmatpush2.msra.mxu0 0.0
  %1175 = vmatprep.subr.mxu0 0.0
  %1176 = vmatpush2.msra.mxu0 0.0
  %1177 = vmatprep.subr.mxu0 0.0
  %1178 = vmatpush2.msra.mxu0 0.0
  %1179 = vmatprep.subr.mxu0 0.0
  %1180 = vmatpush2.msra.mxu0 0.0
  %1181 = vmatprep.subr.mxu0 0.0
  %1182 = vmatpush2.msra.mxu0 0.0
  %1183 = vmatprep.mubr.f32.mxu0 0.0
  %1184 = vmatmul.mubr.f32.gmra.mxu0 %v197
  %v1185 = vpop.f32.mrf.mxu0
  %v1186 = vadd.f32 0.0, %v1185
  %v1187 = vpop.f32.mrf.mxu0
  %1188 = vdwg.mxu0
  %v1189 = vadd.f32 %v1081, %v1186
  %v1190 = vxor.u32 %v1189, 2147483648
  %v1191 = vmul.f32 %v1190, 1.442695
  %v1192 = vpow.pop %v1191
  %v1193 = vadd.f32 %v1192, 1.0
  %v1194 = vrcp.pop %v1193
  %v1195 = vmul.f32 1.0, %v1194
  %v1196 = vtanh.pop %v1189
  %v1197 = vmul.f32 %v1195, 0.0
  %1199 = vrot.lane.b32.xlu0 %v1196, 64
  %v1200 = vpop.permute.xlu0 %1199
  %v1202 = vmul.f32 %v1195, %v1200
  %1204 = vrot.lane.b32.xlu0 %v1202, 32
  %v1205 = vpop.permute.xlu0 %1204
  %v1207 = vadd.f32 %v1197, %v1205
  %v1208 = vtanh.pop %v1207
  %1210 = vrot.lane.b32.xlu0 %v1208, 64
  %v1211 = vpop.permute.xlu0 %1210
  %v1213 = vmul.f32 %v1195, %v1211
  %1215 = vrot.lane.b32.xlu0 %v1213, 32
  %v1216 = vpop.permute.xlu0 %1215
  %v1217 = vsel %vm195, %v1216, 0
  %1219 = vmatprep.subr.mxu0 0.0
  %1220 = vmatpush1.msra.mxu0 0.0
  %1221 = vmatprep.subr.mxu0 0.0
  %1222 = vmatpush1.msra.mxu0 0.0
  %1223 = vmatprep.subr.mxu0 0.0
  %1224 = vmatpush1.msra.mxu0 0.0
  %1225 = vmatprep.subr.mxu0 0.0
  %1226 = vmatpush1.msra.mxu0 0.0
  %1227 = vmatprep.subr.mxu0 0.0
  %1228 = vmatpush1.msra.mxu0 0.0
  %1229 = vmatprep.subr.mxu0 0.0
  %1230 = vmatpush1.msra.mxu0 0.0
  %1231 = vmatprep.subr.mxu0 0.0
  %1232 = vmatpush1.msra.mxu0 0.0
  %1233 = vmatprep.subr.mxu0 0.0
  %1234 = vmatpush1.msra.mxu0 0.0
  %1235 = vmatprep.subr.mxu0 0.0
  %1236 = vmatpush1.msra.mxu0 0.0
  %1237 = vmatprep.subr.mxu0 0.0
  %1238 = vmatpush1.msra.mxu0 0.0
  %1239 = vmatprep.subr.mxu0 0.0
  %1240 = vmatpush1.msra.mxu0 0.0
  %1241 = vmatprep.subr.mxu0 0.0
  %1242 = vmatpush1.msra.mxu0 0.0
  %1243 = vmatprep.subr.mxu0 0.0
  %1244 = vmatpush1.msra.mxu0 %v1001
  %1245 = vmatprep.subr.mxu0 0.0
  %1246 = vmatpush1.msra.mxu0 %v1000
  %1247 = vmatprep.subr.mxu0 0.0
  %1248 = vmatpush1.msra.mxu0 %v999
  %1249 = vmatprep.subr.mxu0 0.0
  %1250 = vmatpush1.msra.mxu0 %v998
  %1251 = vmatprep.subr.mxu0 0.0
  %1252 = vmatpush2.msra.mxu0 0.0
  %1253 = vmatprep.subr.mxu0 0.0
  %1254 = vmatpush2.msra.mxu0 0.0
  %1255 = vmatprep.subr.mxu0 0.0
  %1256 = vmatpush2.msra.mxu0 0.0
  %1257 = vmatprep.subr.mxu0 0.0
  %1258 = vmatpush2.msra.mxu0 0.0
  %1259 = vmatprep.subr.mxu0 0.0
  %1260 = vmatpush2.msra.mxu0 0.0
  %1261 = vmatprep.subr.mxu0 0.0
  %1262 = vmatpush2.msra.mxu0 0.0
  %1263 = vmatprep.subr.mxu0 0.0
  %1264 = vmatpush2.msra.mxu0 0.0
  %1265 = vmatprep.subr.mxu0 0.0
  %1266 = vmatpush2.msra.mxu0 0.0
  %1267 = vmatprep.subr.mxu0 0.0
  %1268 = vmatpush2.msra.mxu0 0.0
  %1269 = vmatprep.subr.mxu0 0.0
  %1270 = vmatpush2.msra.mxu0 0.0
  %1271 = vmatprep.subr.mxu0 0.0
  %1272 = vmatpush2.msra.mxu0 0.0
  %1273 = vmatprep.subr.mxu0 0.0
  %1274 = vmatpush2.msra.mxu0 0.0
  %1275 = vmatprep.subr.mxu0 0.0
  %1276 = vmatpush2.msra.mxu0 0.0
  %1277 = vmatprep.subr.mxu0 0.0
  %1278 = vmatpush2.msra.mxu0 0.0
  %1279 = vmatprep.subr.mxu0 0.0
  %1280 = vmatpush2.msra.mxu0 0.0
  %1281 = vmatprep.subr.mxu0 0.0
  %1282 = vmatpush2.msra.mxu0 0.0
  %1283 = vmatprep.mubr.f32.mxu0 0.0
  %1284 = vmatmul.mubr.f32.gmra.mxu0 %v1217
  %v1285 = vpop.f32.mrf.mxu0
  %v1286 = vadd.f32 0.0, %v1285
  %v1287 = vpop.f32.mrf.mxu0
  %1288 = vdwg.mxu0
  %v1289 = vadd.f32 %v1086, %v1286
  %v1290 = vxor.u32 %v1289, 2147483648
  %v1291 = vmul.f32 %v1290, 1.442695
  %v1292 = vpow.pop %v1291
  %v1293 = vadd.f32 %v1292, 1.0
  %v1294 = vrcp.pop %v1293
  %v1295 = vmul.f32 1.0, %v1294
  %v1296 = vtanh.pop %v1289
  %v1297 = vmul.f32 %v1295, %v1207
  %1299 = vrot.lane.b32.xlu0 %v1296, 64
  %v1300 = vpop.permute.xlu0 %1299
  %v1302 = vmul.f32 %v1295, %v1300
  %1304 = vrot.lane.b32.xlu0 %v1302, 32
  %v1305 = vpop.permute.xlu0 %1304
  %v1307 = vadd.f32 %v1297, %v1305
  %v1308 = vtanh.pop %v1307
  %1310 = vrot.lane.b32.xlu0 %v1308, 64
  %v1311 = vpop.permute.xlu0 %1310
  %v1313 = vmul.f32 %v1295, %v1311
  %1315 = vrot.lane.b32.xlu0 %v1313, 32
  %v1316 = vpop.permute.xlu0 %1315
  %v1317 = vsel %vm195, %v1316, 0
  %1319 = vmatprep.subr.mxu0 0.0
  %1320 = vmatpush1.msra.mxu0 0.0
  %1321 = vmatprep.subr.mxu0 0.0
  %1322 = vmatpush1.msra.mxu0 0.0
  %1323 = vmatprep.subr.mxu0 0.0
  %1324 = vmatpush1.msra.mxu0 0.0
  %1325 = vmatprep.subr.mxu0 0.0
  %1326 = vmatpush1.msra.mxu0 0.0
  %1327 = vmatprep.subr.mxu0 0.0
  %1328 = vmatpush1.msra.mxu0 0.0
  %1329 = vmatprep.subr.mxu0 0.0
  %1330 = vmatpush1.msra.mxu0 0.0
  %1331 = vmatprep.subr.mxu0 0.0
  %1332 = vmatpush1.msra.mxu0 0.0
  %1333 = vmatprep.subr.mxu0 0.0
  %1334 = vmatpush1.msra.mxu0 0.0
  %1335 = vmatprep.subr.mxu0 0.0
  %1336 = vmatpush1.msra.mxu0 0.0
  %1337 = vmatprep.subr.mxu0 0.0
  %1338 = vmatpush1.msra.mxu0 0.0
  %1339 = vmatprep.subr.mxu0 0.0
  %1340 = vmatpush1.msra.mxu0 0.0
  %1341 = vmatprep.subr.mxu0 0.0
  %1342 = vmatpush1.msra.mxu0 0.0
  %1343 = vmatprep.subr.mxu0 0.0
  %1344 = vmatpush1.msra.mxu0 %v1001
  %1345 = vmatprep.subr.mxu0 0.0
  %1346 = vmatpush1.msra.mxu0 %v1000
  %1347 = vmatprep.subr.mxu0 0.0
  %1348 = vmatpush1.msra.mxu0 %v999
  %1349 = vmatprep.subr.mxu0 0.0
  %1350 = vmatpush1.msra.mxu0 %v998
  %1351 = vmatprep.subr.mxu0 0.0
  %1352 = vmatpush2.msra.mxu0 0.0
  %1353 = vmatprep.subr.mxu0 0.0
  %1354 = vmatpush2.msra.mxu0 0.0
  %1355 = vmatprep.subr.mxu0 0.0
  %1356 = vmatpush2.msra.mxu0 0.0
  %1357 = vmatprep.subr.mxu0 0.0
  %1358 = vmatpush2.msra.mxu0 0.0
  %1359 = vmatprep.subr.mxu0 0.0
  %1360 = vmatpush2.msra.mxu0 0.0
  %1361 = vmatprep.subr.mxu0 0.0
  %1362 = vmatpush2.msra.mxu0 0.0
  %1363 = vmatprep.subr.mxu0 0.0
  %1364 = vmatpush2.msra.mxu0 0.0
  %1365 = vmatprep.subr.mxu0 0.0
  %1366 = vmatpush2.msra.mxu0 0.0
  %1367 = vmatprep.subr.mxu0 0.0
  %1368 = vmatpush2.msra.mxu0 0.0
  %1369 = vmatprep.subr.mxu0 0.0
  %1370 = vmatpush2.msra.mxu0 0.0
  %1371 = vmatprep.subr.mxu0 0.0
  %1372 = vmatpush2.msra.mxu0 0.0
  %1373 = vmatprep.subr.mxu0 0.0
  %1374 = vmatpush2.msra.mxu0 0.0
  %1375 = vmatprep.subr.mxu0 0.0
  %1376 = vmatpush2.msra.mxu0 0.0
  %1377 = vmatprep.subr.mxu0 0.0
  %1378 = vmatpush2.msra.mxu0 0.0
  %1379 = vmatprep.subr.mxu0 0.0
  %1380 = vmatpush2.msra.mxu0 0.0
  %1381 = vmatprep.subr.mxu0 0.0
  %1382 = vmatpush2.msra.mxu0 0.0
  %1383 = vmatprep.mubr.f32.mxu0 0.0
  %1384 = vmatmul.mubr.f32.gmra.mxu0 %v1317
  %v1385 = vpop.f32.mrf.mxu0
  %v1386 = vadd.f32 0.0, %v1385
  %v1387 = vpop.f32.mrf.mxu0
  %1388 = vdwg.mxu0
  %v1389 = vadd.f32 %v1091, %v1386
  %v1390 = vxor.u32 %v1389, 2147483648
  %v1391 = vmul.f32 %v1390, 1.442695
  %v1392 = vpow.pop %v1391
  %v1393 = vadd.f32 %v1392, 1.0
  %v1394 = vrcp.pop %v1393
  %v1395 = vmul.f32 1.0, %v1394
  %v1396 = vtanh.pop %v1389
  %v1397 = vmul.f32 %v1395, %v1307
  %1399 = vrot.lane.b32.xlu0 %v1396, 64
  %v1400 = vpop.permute.xlu0 %1399
  %v1402 = vmul.f32 %v1395, %v1400
  %1404 = vrot.lane.b32.xlu0 %v1402, 32
  %v1405 = vpop.permute.xlu0 %1404
  %v1407 = vadd.f32 %v1397, %v1405
  %v1408 = vtanh.pop %v1407
  %1410 = vrot.lane.b32.xlu0 %v1408, 64
  %v1411 = vpop.permute.xlu0 %1410
  %v1413 = vmul.f32 %v1395, %v1411
  %1415 = vrot.lane.b32.xlu0 %v1413, 32
  %v1416 = vpop.permute.xlu0 %1415
  %v1417 = vsel %vm195, %v1416, 0
  %1419 = vmatprep.subr.mxu0 0.0
  %1420 = vmatpush1.msra.mxu0 0.0
  %1421 = vmatprep.subr.mxu0 0.0
  %1422 = vmatpush1.msra.mxu0 0.0
  %1423 = vmatprep.subr.mxu0 0.0
  %1424 = vmatpush1.msra.mxu0 0.0
  %1425 = vmatprep.subr.mxu0 0.0
  %1426 = vmatpush1.msra.mxu0 0.0
  %1427 = vmatprep.subr.mxu0 0.0
  %1428 = vmatpush1.msra.mxu0 0.0
  %1429 = vmatprep.subr.mxu0 0.0
  %1430 = vmatpush1.msra.mxu0 0.0
  %1431 = vmatprep.subr.mxu0 0.0
  %1432 = vmatpush1.msra.mxu0 0.0
  %1433 = vmatprep.subr.mxu0 0.0
  %1434 = vmatpush1.msra.mxu0 0.0
  %1435 = vmatprep.subr.mxu0 0.0
  %1436 = vmatpush1.msra.mxu0 0.0
  %1437 = vmatprep.subr.mxu0 0.0
  %1438 = vmatpush1.msra.mxu0 0.0
  %1439 = vmatprep.subr.mxu0 0.0
  %1440 = vmatpush1.msra.mxu0 0.0
  %1441 = vmatprep.subr.mxu0 0.0
  %1442 = vmatpush1.msra.mxu0 0.0
  %1443 = vmatprep.subr.mxu0 0.0
  %1444 = vmatpush1.msra.mxu0 %v1001
  %1445 = vmatprep.subr.mxu0 0.0
  %1446 = vmatpush1.msra.mxu0 %v1000
  %1447 = vmatprep.subr.mxu0 0.0
  %1448 = vmatpush1.msra.mxu0 %v999
  %1449 = vmatprep.subr.mxu0 0.0
  %1450 = vmatpush1.msra.mxu0 %v998
  %1451 = vmatprep.subr.mxu0 0.0
  %1452 = vmatpush2.msra.mxu0 0.0
  %1453 = vmatprep.subr.mxu0 0.0
  %1454 = vmatpush2.msra.mxu0 0.0
  %1455 = vmatprep.subr.mxu0 0.0
  %1456 = vmatpush2.msra.mxu0 0.0
  %1457 = vmatprep.subr.mxu0 0.0
  %1458 = vmatpush2.msra.mxu0 0.0
  %1459 = vmatprep.subr.mxu0 0.0
  %1460 = vmatpush2.msra.mxu0 0.0
  %1461 = vmatprep.subr.mxu0 0.0
  %1462 = vmatpush2.msra.mxu0 0.0
  %1463 = vmatprep.subr.mxu0 0.0
  %1464 = vmatpush2.msra.mxu0 0.0
  %1465 = vmatprep.subr.mxu0 0.0
  %1466 = vmatpush2.msra.mxu0 0.0
  %1467 = vmatprep.subr.mxu0 0.0
  %1468 = vmatpush2.msra.mxu0 0.0
  %1469 = vmatprep.subr.mxu0 0.0
  %1470 = vmatpush2.msra.mxu0 0.0
  %1471 = vmatprep.subr.mxu0 0.0
  %1472 = vmatpush2.msra.mxu0 0.0
  %1473 = vmatprep.subr.mxu0 0.0
  %1474 = vmatpush2.msra.mxu0 0.0
  %1475 = vmatprep.subr.mxu0 0.0
  %1476 = vmatpush2.msra.mxu0 0.0
  %1477 = vmatprep.subr.mxu0 0.0
  %1478 = vmatpush2.msra.mxu0 0.0
  %1479 = vmatprep.subr.mxu0 0.0
  %1480 = vmatpush2.msra.mxu0 0.0
  %1481 = vmatprep.subr.mxu0 0.0
  %1482 = vmatpush2.msra.mxu0 0.0
  %1483 = vmatprep.mubr.f32.mxu0 0.0
  %1484 = vmatmul.mubr.f32.gmra.mxu0 %v1417
  %v1485 = vpop.f32.mrf.mxu0
  %v1486 = vadd.f32 0.0, %v1485
  %v1487 = vpop.f32.mrf.mxu0
  %1488 = vdwg.mxu0
  %v1489 = vadd.f32 %v1096, %v1486
  %v1490 = vxor.u32 %v1489, 2147483648
  %v1491 = vmul.f32 %v1490, 1.442695
  %v1492 = vpow.pop %v1491
  %v1493 = vadd.f32 %v1492, 1.0
  %v1494 = vrcp.pop %v1493
  %v1495 = vmul.f32 1.0, %v1494
  %v1496 = vtanh.pop %v1489
  %v1497 = vmul.f32 %v1495, %v1407
  %1499 = vrot.lane.b32.xlu0 %v1496, 64
  %v1500 = vpop.permute.xlu0 %1499
  %v1502 = vmul.f32 %v1495, %v1500
  %1504 = vrot.lane.b32.xlu0 %v1502, 32
  %v1505 = vpop.permute.xlu0 %1504
  %v1507 = vadd.f32 %v1497, %v1505
  %v1508 = vtanh.pop %v1507
  %1510 = vrot.lane.b32.xlu0 %v1508, 64
  %v1511 = vpop.permute.xlu0 %1510
  %v1513 = vmul.f32 %v1495, %v1511
  %1515 = vrot.lane.b32.xlu0 %v1513, 32
  %v1516 = vpop.permute.xlu0 %1515
  %v1517 = vsel %vm195, %v1516, 0
  %1519 = vmatprep.subr.mxu0 0.0
  %1520 = vmatpush1.msra.mxu0 0.0
  %1521 = vmatprep.subr.mxu0 0.0
  %1522 = vmatpush1.msra.mxu0 0.0
  %1523 = vmatprep.subr.mxu0 0.0
  %1524 = vmatpush1.msra.mxu0 0.0
  %1525 = vmatprep.subr.mxu0 0.0
  %1526 = vmatpush1.msra.mxu0 0.0
  %1527 = vmatprep.subr.mxu0 0.0
  %1528 = vmatpush1.msra.mxu0 0.0
  %1529 = vmatprep.subr.mxu0 0.0
  %1530 = vmatpush1.msra.mxu0 0.0
  %1531 = vmatprep.subr.mxu0 0.0
  %1532 = vmatpush1.msra.mxu0 0.0
  %1533 = vmatprep.subr.mxu0 0.0
  %1534 = vmatpush1.msra.mxu0 0.0
  %1535 = vmatprep.subr.mxu0 0.0
  %1536 = vmatpush1.msra.mxu0 0.0
  %1537 = vmatprep.subr.mxu0 0.0
  %1538 = vmatpush1.msra.mxu0 0.0
  %1539 = vmatprep.subr.mxu0 0.0
  %1540 = vmatpush1.msra.mxu0 0.0
  %1541 = vmatprep.subr.mxu0 0.0
  %1542 = vmatpush1.msra.mxu0 0.0
  %1543 = vmatprep.subr.mxu0 0.0
  %1544 = vmatpush1.msra.mxu0 %v1001
  %1545 = vmatprep.subr.mxu0 0.0
  %1546 = vmatpush1.msra.mxu0 %v1000
  %1547 = vmatprep.subr.mxu0 0.0
  %1548 = vmatpush1.msra.mxu0 %v999
  %1549 = vmatprep.subr.mxu0 0.0
  %1550 = vmatpush1.msra.mxu0 %v998
  %1551 = vmatprep.subr.mxu0 0.0
  %1552 = vmatpush2.msra.mxu0 0.0
  %1553 = vmatprep.subr.mxu0 0.0
  %1554 = vmatpush2.msra.mxu0 0.0
  %1555 = vmatprep.subr.mxu0 0.0
  %1556 = vmatpush2.msra.mxu0 0.0
  %1557 = vmatprep.subr.mxu0 0.0
  %1558 = vmatpush2.msra.mxu0 0.0
  %1559 = vmatprep.subr.mxu0 0.0
  %1560 = vmatpush2.msra.mxu0 0.0
  %1561 = vmatprep.subr.mxu0 0.0
  %1562 = vmatpush2.msra.mxu0 0.0
  %1563 = vmatprep.subr.mxu0 0.0
  %1564 = vmatpush2.msra.mxu0 0.0
  %1565 = vmatprep.subr.mxu0 0.0
  %1566 = vmatpush2.msra.mxu0 0.0
  %1567 = vmatprep.subr.mxu0 0.0
  %1568 = vmatpush2.msra.mxu0 0.0
  %1569 = vmatprep.subr.mxu0 0.0
  %1570 = vmatpush2.msra.mxu0 0.0
  %1571 = vmatprep.subr.mxu0 0.0
  %1572 = vmatpush2.msra.mxu0 0.0
  %1573 = vmatprep.subr.mxu0 0.0
  %1574 = vmatpush2.msra.mxu0 0.0
  %1575 = vmatprep.subr.mxu0 0.0
  %1576 = vmatpush2.msra.mxu0 0.0
  %1577 = vmatprep.subr.mxu0 0.0
  %1578 = vmatpush2.msra.mxu0 0.0
  %1579 = vmatprep.subr.mxu0 0.0
  %1580 = vmatpush2.msra.mxu0 0.0
  %1581 = vmatprep.subr.mxu0 0.0
  %1582 = vmatpush2.msra.mxu0 0.0
  %1583 = vmatprep.mubr.f32.mxu0 0.0
  %1584 = vmatmul.mubr.f32.gmra.mxu0 %v1517
  %v1585 = vpop.f32.mrf.mxu0
  %v1586 = vadd.f32 0.0, %v1585
  %v1587 = vpop.f32.mrf.mxu0
  %1588 = vdwg.mxu0
  %v1589 = vadd.f32 %v1101, %v1586
  %v1590 = vxor.u32 %v1589, 2147483648
  %v1591 = vmul.f32 %v1590, 1.442695
  %v1592 = vpow.pop %v1591
  %v1593 = vadd.f32 %v1592, 1.0
  %v1594 = vrcp.pop %v1593
  %v1595 = vmul.f32 1.0, %v1594
  %v1596 = vtanh.pop %v1589
  %v1597 = vmul.f32 %v1595, %v1507
  %1599 = vrot.lane.b32.xlu0 %v1596, 64
  %v1600 = vpop.permute.xlu0 %1599
  %v1602 = vmul.f32 %v1595, %v1600
  %1604 = vrot.lane.b32.xlu0 %v1602, 32
  %v1605 = vpop.permute.xlu0 %1604
  %v1607 = vadd.f32 %v1597, %v1605
  %v1608 = vtanh.pop %v1607
  %1610 = vrot.lane.b32.xlu0 %v1608, 64
  %v1611 = vpop.permute.xlu0 %1610
  %v1613 = vmul.f32 %v1595, %v1611
  %1615 = vrot.lane.b32.xlu0 %v1613, 32
  %v1616 = vpop.permute.xlu0 %1615
  %v1617 = vsel %vm195, %v1616, 0
  %1619 = vmatprep.subr.mxu0 0.0
  %1620 = vmatpush1.msra.mxu0 0.0
  %1621 = vmatprep.subr.mxu0 0.0
  %1622 = vmatpush1.msra.mxu0 0.0
  %1623 = vmatprep.subr.mxu0 0.0
  %1624 = vmatpush1.msra.mxu0 0.0
  %1625 = vmatprep.subr.mxu0 0.0
  %1626 = vmatpush1.msra.mxu0 0.0
  %1627 = vmatprep.subr.mxu0 0.0
  %1628 = vmatpush1.msra.mxu0 0.0
  %1629 = vmatprep.subr.mxu0 0.0
  %1630 = vmatpush1.msra.mxu0 0.0
  %1631 = vmatprep.subr.mxu0 0.0
  %1632 = vmatpush1.msra.mxu0 0.0
  %1633 = vmatprep.subr.mxu0 0.0
  %1634 = vmatpush1.msra.mxu0 0.0
  %1635 = vmatprep.subr.mxu0 0.0
  %1636 = vmatpush1.msra.mxu0 0.0
  %1637 = vmatprep.subr.mxu0 0.0
  %1638 = vmatpush1.msra.mxu0 0.0
  %1639 = vmatprep.subr.mxu0 0.0
  %1640 = vmatpush1.msra.mxu0 0.0
  %1641 = vmatprep.subr.mxu0 0.0
  %1642 = vmatpush1.msra.mxu0 0.0
  %1643 = vmatprep.subr.mxu0 0.0
  %1644 = vmatpush1.msra.mxu0 %v1001
  %1645 = vmatprep.subr.mxu0 0.0
  %1646 = vmatpush1.msra.mxu0 %v1000
  %1647 = vmatprep.subr.mxu0 0.0
  %1648 = vmatpush1.msra.mxu0 %v999
  %1649 = vmatprep.subr.mxu0 0.0
  %1650 = vmatpush1.msra.mxu0 %v998
  %1651 = vmatprep.subr.mxu0 0.0
  %1652 = vmatpush2.msra.mxu0 0.0
  %1653 = vmatprep.subr.mxu0 0.0
  %1654 = vmatpush2.msra.mxu0 0.0
  %1655 = vmatprep.subr.mxu0 0.0
  %1656 = vmatpush2.msra.mxu0 0.0
  %1657 = vmatprep.subr.mxu0 0.0
  %1658 = vmatpush2.msra.mxu0 0.0
  %1659 = vmatprep.subr.mxu0 0.0
  %1660 = vmatpush2.msra.mxu0 0.0
  %1661 = vmatprep.subr.mxu0 0.0
  %1662 = vmatpush2.msra.mxu0 0.0
  %1663 = vmatprep.subr.mxu0 0.0
  %1664 = vmatpush2.msra.mxu0 0.0
  %1665 = vmatprep.subr.mxu0 0.0
  %1666 = vmatpush2.msra.mxu0 0.0
  %1667 = vmatprep.subr.mxu0 0.0
  %1668 = vmatpush2.msra.mxu0 0.0
  %1669 = vmatprep.subr.mxu0 0.0
  %1670 = vmatpush2.msra.mxu0 0.0
  %1671 = vmatprep.subr.mxu0 0.0
  %1672 = vmatpush2.msra.mxu0 0.0
  %1673 = vmatprep.subr.mxu0 0.0
  %1674 = vmatpush2.msra.mxu0 0.0
  %1675 = vmatprep.subr.mxu0 0.0
  %1676 = vmatpush2.msra.mxu0 0.0
  %1677 = vmatprep.subr.mxu0 0.0
  %1678 = vmatpush2.msra.mxu0 0.0
  %1679 = vmatprep.subr.mxu0 0.0
  %1680 = vmatpush2.msra.mxu0 0.0
  %1681 = vmatprep.subr.mxu0 0.0
  %1682 = vmatpush2.msra.mxu0 0.0
  %1683 = vmatprep.mubr.f32.mxu0 0.0
  %1684 = vmatmul.mubr.f32.gmra.mxu0 %v1617
  %v1685 = vpop.f32.mrf.mxu0
  %v1686 = vadd.f32 0.0, %v1685
  %v1687 = vpop.f32.mrf.mxu0
  %1688 = vdwg.mxu0
  %v1689 = vadd.f32 %v1106, %v1686
  %v1690 = vxor.u32 %v1689, 2147483648
  %v1691 = vmul.f32 %v1690, 1.442695
  %v1692 = vpow.pop %v1691
  %v1693 = vadd.f32 %v1692, 1.0
  %v1694 = vrcp.pop %v1693
  %v1695 = vmul.f32 1.0, %v1694
  %v1696 = vtanh.pop %v1689
  %v1697 = vmul.f32 %v1695, %v1607
  %1699 = vrot.lane.b32.xlu0 %v1696, 64
  %v1700 = vpop.permute.xlu0 %1699
  %v1702 = vmul.f32 %v1695, %v1700
  %1704 = vrot.lane.b32.xlu0 %v1702, 32
  %v1705 = vpop.permute.xlu0 %1704
  %v1707 = vadd.f32 %v1697, %v1705
  %v1708 = vtanh.pop %v1707
  %1710 = vrot.lane.b32.xlu0 %v1708, 64
  %v1711 = vpop.permute.xlu0 %1710
  %v1713 = vmul.f32 %v1695, %v1711
  %1715 = vrot.lane.b32.xlu0 %v1713, 32
  %v1716 = vpop.permute.xlu0 %1715
  %v1717 = vsel %vm195, %v1716, 0
  %1719 = vmatprep.subr.mxu0 0.0
  %1720 = vmatpush1.msra.mxu0 0.0
  %1721 = vmatprep.subr.mxu0 0.0
  %1722 = vmatpush1.msra.mxu0 0.0
  %1723 = vmatprep.subr.mxu0 0.0
  %1724 = vmatpush1.msra.mxu0 0.0
  %1725 = vmatprep.subr.mxu0 0.0
  %1726 = vmatpush1.msra.mxu0 0.0
  %1727 = vmatprep.subr.mxu0 0.0
  %1728 = vmatpush1.msra.mxu0 0.0
  %1729 = vmatprep.subr.mxu0 0.0
  %1730 = vmatpush1.msra.mxu0 0.0
  %1731 = vmatprep.subr.mxu0 0.0
  %1732 = vmatpush1.msra.mxu0 0.0
  %1733 = vmatprep.subr.mxu0 0.0
  %1734 = vmatpush1.msra.mxu0 0.0
  %1735 = vmatprep.subr.mxu0 0.0
  %1736 = vmatpush1.msra.mxu0 0.0
  %1737 = vmatprep.subr.mxu0 0.0
  %1738 = vmatpush1.msra.mxu0 0.0
  %1739 = vmatprep.subr.mxu0 0.0
  %1740 = vmatpush1.msra.mxu0 0.0
  %1741 = vmatprep.subr.mxu0 0.0
  %1742 = vmatpush1.msra.mxu0 0.0
  %1743 = vmatprep.subr.mxu0 0.0
  %1744 = vmatpush1.msra.mxu0 %v1001
  %1745 = vmatprep.subr.mxu0 0.0
  %1746 = vmatpush1.msra.mxu0 %v1000
  %1747 = vmatprep.subr.mxu0 0.0
  %1748 = vmatpush1.msra.mxu0 %v999
  %1749 = vmatprep.subr.mxu0 0.0
  %1750 = vmatpush1.msra.mxu0 %v998
  %1751 = vmatprep.subr.mxu0 0.0
  %1752 = vmatpush2.msra.mxu0 0.0
  %1753 = vmatprep.subr.mxu0 0.0
  %1754 = vmatpush2.msra.mxu0 0.0
  %1755 = vmatprep.subr.mxu0 0.0
  %1756 = vmatpush2.msra.mxu0 0.0
  %1757 = vmatprep.subr.mxu0 0.0
  %1758 = vmatpush2.msra.mxu0 0.0
  %1759 = vmatprep.subr.mxu0 0.0
  %1760 = vmatpush2.msra.mxu0 0.0
  %1761 = vmatprep.subr.mxu0 0.0
  %1762 = vmatpush2.msra.mxu0 0.0
  %1763 = vmatprep.subr.mxu0 0.0
  %1764 = vmatpush2.msra.mxu0 0.0
  %1765 = vmatprep.subr.mxu0 0.0
  %1766 = vmatpush2.msra.mxu0 0.0
  %1767 = vmatprep.subr.mxu0 0.0
  %1768 = vmatpush2.msra.mxu0 0.0
  %1769 = vmatprep.subr.mxu0 0.0
  %1770 = vmatpush2.msra.mxu0 0.0
  %1771 = vmatprep.subr.mxu0 0.0
  %1772 = vmatpush2.msra.mxu0 0.0
  %1773 = vmatprep.subr.mxu0 0.0
  %1774 = vmatpush2.msra.mxu0 0.0
  %1775 = vmatprep.subr.mxu0 0.0
  %1776 = vmatpush2.msra.mxu0 0.0
  %1777 = vmatprep.subr.mxu0 0.0
  %1778 = vmatpush2.msra.mxu0 0.0
  %1779 = vmatprep.subr.mxu0 0.0
  %1780 = vmatpush2.msra.mxu0 0.0
  %1781 = vmatprep.subr.mxu0 0.0
  %1782 = vmatpush2.msra.mxu0 0.0
  %1783 = vmatprep.mubr.f32.mxu0 0.0
  %1784 = vmatmul.mubr.f32.gmra.mxu0 %v1717
  %v1785 = vpop.f32.mrf.mxu0
  %v1786 = vadd.f32 0.0, %v1785
  %v1787 = vpop.f32.mrf.mxu0
  %1788 = vdwg.mxu0
  %v1789 = vadd.f32 %v1111, %v1786
  %v1790 = vxor.u32 %v1789, 2147483648
  %v1791 = vmul.f32 %v1790, 1.442695
  %v1792 = vpow.pop %v1791
  %v1793 = vadd.f32 %v1792, 1.0
  %v1794 = vrcp.pop %v1793
  %v1795 = vmul.f32 1.0, %v1794
  %v1796 = vtanh.pop %v1789
  %v1797 = vmul.f32 %v1795, %v1707
  %1799 = vrot.lane.b32.xlu0 %v1796, 64
  %v1800 = vpop.permute.xlu0 %1799
  %v1802 = vmul.f32 %v1795, %v1800
  %1804 = vrot.lane.b32.xlu0 %v1802, 32
  %v1805 = vpop.permute.xlu0 %1804
  %v1807 = vadd.f32 %v1797, %v1805
  %v1808 = vtanh.pop %v1807
  %1810 = vrot.lane.b32.xlu0 %v1808, 64
  %v1811 = vpop.permute.xlu0 %1810
  %v1813 = vmul.f32 %v1795, %v1811
  %1815 = vrot.lane.b32.xlu0 %v1813, 32
  %v1816 = vpop.permute.xlu0 %1815
  %v1817 = vsel %vm195, %v1816, 0
  %1819 = vmatprep.subr.mxu0 0.0
  %1820 = vmatpush1.msra.mxu0 0.0
  %1821 = vmatprep.subr.mxu0 0.0
  %1822 = vmatpush1.msra.mxu0 0.0
  %1823 = vmatprep.subr.mxu0 0.0
  %1824 = vmatpush1.msra.mxu0 0.0
  %1825 = vmatprep.subr.mxu0 0.0
  %1826 = vmatpush1.msra.mxu0 0.0
  %1827 = vmatprep.subr.mxu0 0.0
  %1828 = vmatpush1.msra.mxu0 0.0
  %1829 = vmatprep.subr.mxu0 0.0
  %1830 = vmatpush1.msra.mxu0 0.0
  %1831 = vmatprep.subr.mxu0 0.0
  %1832 = vmatpush1.msra.mxu0 0.0
  %1833 = vmatprep.subr.mxu0 0.0
  %1834 = vmatpush1.msra.mxu0 0.0
  %1835 = vmatprep.subr.mxu0 0.0
  %1836 = vmatpush1.msra.mxu0 0.0
  %1837 = vmatprep.subr.mxu0 0.0
  %1838 = vmatpush1.msra.mxu0 0.0
  %1839 = vmatprep.subr.mxu0 0.0
  %1840 = vmatpush1.msra.mxu0 0.0
  %1841 = vmatprep.subr.mxu0 0.0
  %1842 = vmatpush1.msra.mxu0 0.0
  %1843 = vmatprep.subr.mxu0 0.0
  %1844 = vmatpush1.msra.mxu0 %v1001
  %1845 = vmatprep.subr.mxu0 0.0
  %1846 = vmatpush1.msra.mxu0 %v1000
  %1847 = vmatprep.subr.mxu0 0.0
  %1848 = vmatpush1.msra.mxu0 %v999
  %1849 = vmatprep.subr.mxu0 0.0
  %1850 = vmatpush1.msra.mxu0 %v998
  %1851 = vmatprep.subr.mxu0 0.0
  %1852 = vmatpush2.msra.mxu0 0.0
  %1853 = vmatprep.subr.mxu0 0.0
  %1854 = vmatpush2.msra.mxu0 0.0
  %1855 = vmatprep.subr.mxu0 0.0
  %1856 = vmatpush2.msra.mxu0 0.0
  %1857 = vmatprep.subr.mxu0 0.0
  %1858 = vmatpush2.msra.mxu0 0.0
  %1859 = vmatprep.subr.mxu0 0.0
  %1860 = vmatpush2.msra.mxu0 0.0
  %1861 = vmatprep.subr.mxu0 0.0
  %1862 = vmatpush2.msra.mxu0 0.0
  %1863 = vmatprep.subr.mxu0 0.0
  %1864 = vmatpush2.msra.mxu0 0.0
  %1865 = vmatprep.subr.mxu0 0.0
  %1866 = vmatpush2.msra.mxu0 0.0
  %1867 = vmatprep.subr.mxu0 0.0
  %1868 = vmatpush2.msra.mxu0 0.0
  %1869 = vmatprep.subr.mxu0 0.0
  %1870 = vmatpush2.msra.mxu0 0.0
  %1871 = vmatprep.subr.mxu0 0.0
  %1872 = vmatpush2.msra.mxu0 0.0
  %1873 = vmatprep.subr.mxu0 0.0
  %1874 = vmatpush2.msra.mxu0 0.0
  %1875 = vmatprep.subr.mxu0 0.0
  %1876 = vmatpush2.msra.mxu0 0.0
  %1877 = vmatprep.subr.mxu0 0.0
  %1878 = vmatpush2.msra.mxu0 0.0
  %1879 = vmatprep.subr.mxu0 0.0
  %1880 = vmatpush2.msra.mxu0 0.0
  %1881 = vmatprep.subr.mxu0 0.0
  %1882 = vmatpush2.msra.mxu0 0.0
  %1883 = vmatprep.mubr.f32.mxu0 0.0
  %1884 = vmatmul.mubr.f32.gmra.mxu0 %v1817
  %v1885 = vpop.f32.mrf.mxu0
  %v1886 = vadd.f32 0.0, %v1885
  %v1887 = vpop.f32.mrf.mxu0
  %1888 = vdwg.mxu0
  %v1889 = vadd.f32 %v1116, %v1886
  %v1890 = vxor.u32 %v1889, 2147483648
  %v1891 = vmul.f32 %v1890, 1.442695
  %v1892 = vpow.pop %v1891
  %v1893 = vadd.f32 %v1892, 1.0
  %v1894 = vrcp.pop %v1893
  %v1895 = vmul.f32 1.0, %v1894
  %v1896 = vtanh.pop %v1889
  %v1897 = vmul.f32 %v1895, %v1807
  %1899 = vrot.lane.b32.xlu0 %v1896, 64
  %v1900 = vpop.permute.xlu0 %1899
  %v1902 = vmul.f32 %v1895, %v1900
  %1904 = vrot.lane.b32.xlu0 %v1902, 32
  %v1905 = vpop.permute.xlu0 %1904
  %v1907 = vadd.f32 %v1897, %v1905
  %v1908 = vtanh.pop %v1907
  %1910 = vrot.lane.b32.xlu0 %v1908, 64
  %v1911 = vpop.permute.xlu0 %1910
  %v1913 = vmul.f32 %v1895, %v1911
  %v1914 = vld [vmem:[%s7] sm:$0xff]
  %v1915 = vld [vmem:[%s7 + $0x8] sm:$0xff]
  %v1916 = vld [vmem:[%s7 + $0x10] sm:$0xff]
  %v1917 = vld [vmem:[%s7 + $0x18] sm:$0xff]
  %v1918 = vld [vmem:[%s8] sm:$0x1]
  %v1920 = vlaneseq
  %v1921 = vshrl.u32 %v1920, 7
  %v1922 = vsub.s32 0, %v1921
  %v1923 = vrot.slane %v1918, %v1922
  %1926 = vrot.lane.b32.xlu0 %v1913, 32
  %v1927 = vpop.permute.xlu0 %1926
  %v1928 = vsel %vm195, %v1927, 0
  %1930 = vmatprep.subr.mxu0 0.0
  %1931 = vmatpush1.msra.mxu0 0.0
  %1932 = vmatprep.subr.mxu0 0.0
  %1933 = vmatpush1.msra.mxu0 0.0
  %1934 = vmatprep.subr.mxu0 0.0
  %1935 = vmatpush1.msra.mxu0 0.0
  %1936 = vmatprep.subr.mxu0 0.0
  %1937 = vmatpush1.msra.mxu0 0.0
  %1938 = vmatprep.subr.mxu0 0.0
  %1939 = vmatpush1.msra.mxu0 0.0
  %1940 = vmatprep.subr.mxu0 0.0
  %1941 = vmatpush1.msra.mxu0 0.0
  %1942 = vmatprep.subr.mxu0 0.0
  %1943 = vmatpush1.msra.mxu0 0.0
  %1944 = vmatprep.subr.mxu0 0.0
  %1945 = vmatpush1.msra.mxu0 0.0
  %1946 = vmatprep.subr.mxu0 0.0
  %1947 = vmatpush1.msra.mxu0 0.0
  %1948 = vmatprep.subr.mxu0 0.0
  %1949 = vmatpush1.msra.mxu0 0.0
  %1950 = vmatprep.subr.mxu0 0.0
  %1951 = vmatpush1.msra.mxu0 0.0
  %1952 = vmatprep.subr.mxu0 0.0
  %1953 = vmatpush1.msra.mxu0 0.0
  %1954 = vmatprep.subr.mxu0 0.0
  %1955 = vmatpush1.msra.mxu0 %v1917
  %1956 = vmatprep.subr.mxu0 0.0
  %1957 = vmatpush1.msra.mxu0 %v1916
  %1958 = vmatprep.subr.mxu0 0.0
  %1959 = vmatpush1.msra.mxu0 %v1915
  %1960 = vmatprep.subr.mxu0 0.0
  %1961 = vmatpush1.msra.mxu0 %v1914
  %1962 = vmatprep.subr.mxu0 0.0
  %1963 = vmatpush2.msra.mxu0 0.0
  %1964 = vmatprep.subr.mxu0 0.0
  %1965 = vmatpush2.msra.mxu0 0.0
  %1966 = vmatprep.subr.mxu0 0.0
  %1967 = vmatpush2.msra.mxu0 0.0
  %1968 = vmatprep.subr.mxu0 0.0
  %1969 = vmatpush2.msra.mxu0 0.0
  %1970 = vmatprep.subr.mxu0 0.0
  %1971 = vmatpush2.msra.mxu0 0.0
  %1972 = vmatprep.subr.mxu0 0.0
  %1973 = vmatpush2.msra.mxu0 0.0
  %1974 = vmatprep.subr.mxu0 0.0
  %1975 = vmatpush2.msra.mxu0 0.0
  %1976 = vmatprep.subr.mxu0 0.0
  %1977 = vmatpush2.msra.mxu0 0.0
  %1978 = vmatprep.subr.mxu0 0.0
  %1979 = vmatpush2.msra.mxu0 0.0
  %1980 = vmatprep.subr.mxu0 0.0
  %1981 = vmatpush2.msra.mxu0 0.0
  %1982 = vmatprep.subr.mxu0 0.0
  %1983 = vmatpush2.msra.mxu0 0.0
  %1984 = vmatprep.subr.mxu0 0.0
  %1985 = vmatpush2.msra.mxu0 0.0
  %1986 = vmatprep.subr.mxu0 0.0
  %1987 = vmatpush2.msra.mxu0 0.0
  %1988 = vmatprep.subr.mxu0 0.0
  %1989 = vmatpush2.msra.mxu0 0.0
  %1990 = vmatprep.subr.mxu0 0.0
  %1991 = vmatpush2.msra.mxu0 0.0
  %1992 = vmatprep.subr.mxu0 0.0
  %1993 = vmatpush2.msra.mxu0 0.0
  %1994 = vmatprep.mubr.f32.mxu0 0.0
  %1995 = vmatmul.mubr.f32.gmra.mxu0 %v1217
  %v1996 = vpop.f32.mrf.mxu0
  %v1997 = vadd.f32 %v1923, %v1996
  %v1998 = vpop.f32.mrf.mxu0
  %1999 = vmatprep.mubr.f32.mxu0 0.0
  %2000 = vmatmul.mubr.f32.gmra.mxu0 %v1317
  %v2001 = vpop.f32.mrf.mxu0
  %v2002 = vadd.f32 %v1923, %v2001
  %v2003 = vpop.f32.mrf.mxu0
  %2004 = vmatprep.mubr.f32.mxu0 0.0
  %2005 = vmatmul.mubr.f32.gmra.mxu0 %v1417
  %v2006 = vpop.f32.mrf.mxu0
  %v2007 = vadd.f32 %v1923, %v2006
  %v2008 = vpop.f32.mrf.mxu0
  %2009 = vmatprep.mubr.f32.mxu0 0.0
  %2010 = vmatmul.mubr.f32.gmra.mxu0 %v1517
  %v2011 = vpop.f32.mrf.mxu0
  %v2012 = vadd.f32 %v1923, %v2011
  %v2013 = vpop.f32.mrf.mxu0
  %2014 = vmatprep.mubr.f32.mxu0 0.0
  %2015 = vmatmul.mubr.f32.gmra.mxu0 %v1617
  %v2016 = vpop.f32.mrf.mxu0
  %v2017 = vadd.f32 %v1923, %v2016
  %v2018 = vpop.f32.mrf.mxu0
  %2019 = vmatprep.mubr.f32.mxu0 0.0
  %2020 = vmatmul.mubr.f32.gmra.mxu0 %v1717
  %v2021 = vpop.f32.mrf.mxu0
  %v2022 = vadd.f32 %v1923, %v2021
  %v2023 = vpop.f32.mrf.mxu0
  %2024 = vmatprep.mubr.f32.mxu0 0.0
  %2025 = vmatmul.mubr.f32.gmra.mxu0 %v1817
  %v2026 = vpop.f32.mrf.mxu0
  %v2027 = vadd.f32 %v1923, %v2026
  %v2028 = vpop.f32.mrf.mxu0
  %2029 = vmatprep.mubr.f32.mxu0 0.0
  %2030 = vmatmul.mubr.f32.gmra.mxu0 %v1928
  %v2031 = vpop.f32.mrf.mxu0
  %v2032 = vadd.f32 %v1923, %v2031
  %v2033 = vpop.f32.mrf.mxu0
  %2034 = vdwg.mxu0
  %v2035 = vmax.f32 %v1997, 0.0
  %v2036 = vmax.f32 %v2002, 0.0
  %v2037 = vmax.f32 %v2007, 0.0
  %v2038 = vmax.f32 %v2012, 0.0
  %v2039 = vmax.f32 %v2017, 0.0
  %v2040 = vmax.f32 %v2022, 0.0
  %v2041 = vmax.f32 %v2027, 0.0
  %v2042 = vmax.f32 %v2032, 0.0
  %v2043 = vld [vmem:[%s9] sm:$0xff]
  %v2044 = vld [vmem:[%s9 + $0x8] sm:$0xff]
  %v2045 = vld [vmem:[%s9 + $0x10] sm:$0xff]
  %v2046 = vld [vmem:[%s9 + $0x18] sm:$0xff]
  %v2047 = vld [vmem:[%s9 + $0x20] sm:$0xff]
  %v2048 = vld [vmem:[%s9 + $0x28] sm:$0xff]
  %v2049 = vld [vmem:[%s9 + $0x30] sm:$0xff]
  %v2050 = vld [vmem:[%s9 + $0x38] sm:$0xff]
  %v2051 = vld [vmem:[%s9 + $0x40] sm:$0xff]
  %v2052 = vld [vmem:[%s9 + $0x48] sm:$0xff]
  %v2053 = vld [vmem:[%s10] sm:$0x1]
  %v2055 = vlaneseq
  %v2056 = vshrl.u32 %v2055, 7
  %v2057 = vsub.s32 0, %v2056
  %v2058 = vrot.slane %v2053, %v2057
  %vm2060 = vcmask 654336
  %v2062 = vsel %vm2060, %v2035, 0
  %v2065 = vsel %vm2060, %v2036, 0
  %v2068 = vsel %vm2060, %v2037, 0
  %v2071 = vsel %vm2060, %v2038, 0
  %v2074 = vsel %vm2060, %v2039, 0
  %v2077 = vsel %vm2060, %v2040, 0
  %v2080 = vsel %vm2060, %v2041, 0
  %v2083 = vsel %vm2060, %v2042, 0
  %2085 = vmatprep.subr.mxu0 0.0
  %2086 = vmatpush1.msra.mxu0 0.0
  %2087 = vmatprep.subr.mxu0 0.0
  %2088 = vmatpush1.msra.mxu0 0.0
  %2089 = vmatprep.subr.mxu0 0.0
  %2090 = vmatpush1.msra.mxu0 0.0
  %2091 = vmatprep.subr.mxu0 0.0
  %2092 = vmatpush1.msra.mxu0 0.0
  %2093 = vmatprep.subr.mxu0 0.0
  %2094 = vmatpush1.msra.mxu0 0.0
  %2095 = vmatprep.subr.mxu0 0.0
  %2096 = vmatpush1.msra.mxu0 0.0
  %2097 = vmatprep.subr.mxu0 0.0
  %2098 = vmatpush1.msra.mxu0 %v2052
  %2099 = vmatprep.subr.mxu0 0.0
  %2100 = vmatpush1.msra.mxu0 %v2051
  %2101 = vmatprep.subr.mxu0 0.0
  %2102 = vmatpush1.msra.mxu0 %v2050
  %2103 = vmatprep.subr.mxu0 0.0
  %2104 = vmatpush1.msra.mxu0 %v2049
  %2105 = vmatprep.subr.mxu0 0.0
  %2106 = vmatpush1.msra.mxu0 %v2048
  %2107 = vmatprep.subr.mxu0 0.0
  %2108 = vmatpush1.msra.mxu0 %v2047
  %2109 = vmatprep.subr.mxu0 0.0
  %2110 = vmatpush1.msra.mxu0 %v2046
  %2111 = vmatprep.subr.mxu0 0.0
  %2112 = vmatpush1.msra.mxu0 %v2045
  %2113 = vmatprep.subr.mxu0 0.0
  %2114 = vmatpush1.msra.mxu0 %v2044
  %2115 = vmatprep.subr.mxu0 0.0
  %2116 = vmatpush1.msra.mxu0 %v2043
  %2117 = vmatprep.subr.mxu0 0.0
  %2118 = vmatpush2.msra.mxu0 0.0
  %2119 = vmatprep.subr.mxu0 0.0
  %2120 = vmatpush2.msra.mxu0 0.0
  %2121 = vmatprep.subr.mxu0 0.0
  %2122 = vmatpush2.msra.mxu0 0.0
  %2123 = vmatprep.subr.mxu0 0.0
  %2124 = vmatpush2.msra.mxu0 0.0
  %2125 = vmatprep.subr.mxu0 0.0
  %2126 = vmatpush2.msra.mxu0 0.0
  %2127 = vmatprep.subr.mxu0 0.0
  %2128 = vmatpush2.msra.mxu0 0.0
  %2129 = vmatprep.subr.mxu0 0.0
  %2130 = vmatpush2.msra.mxu0 0.0
  %2131 = vmatprep.subr.mxu0 0.0
  %2132 = vmatpush2.msra.mxu0 0.0
  %2133 = vmatprep.subr.mxu0 0.0
  %2134 = vmatpush2.msra.mxu0 0.0
  %2135 = vmatprep.subr.mxu0 0.0
  %2136 = vmatpush2.msra.mxu0 0.0
  %2137 = vmatprep.subr.mxu0 0.0
  %2138 = vmatpush2.msra.mxu0 0.0
  %2139 = vmatprep.subr.mxu0 0.0
  %2140 = vmatpush2.msra.mxu0 0.0
  %2141 = vmatprep.subr.mxu0 0.0
  %2142 = vmatpush2.msra.mxu0 0.0
  %2143 = vmatprep.subr.mxu0 0.0
  %2144 = vmatpush2.msra.mxu0 0.0
  %2145 = vmatprep.subr.mxu0 0.0
  %2146 = vmatpush2.msra.mxu0 0.0
  %2147 = vmatprep.subr.mxu0 0.0
  %2148 = vmatpush2.msra.mxu0 0.0
  %2149 = vmatprep.mubr.f32.mxu0 0.0
  %2150 = vmatmul.mubr.f32.gmra.mxu0 %v2062
  %v2151 = vpop.f32.mrf.mxu0
  %v2152 = vadd.f32 %v2058, %v2151
  %v2153 = vpop.f32.mrf.mxu0
  %2154 = vmatprep.mubr.f32.mxu0 0.0
  %2155 = vmatmul.mubr.f32.gmra.mxu0 %v2065
  %v2156 = vpop.f32.mrf.mxu0
  %v2157 = vadd.f32 %v2058, %v2156
  %v2158 = vpop.f32.mrf.mxu0
  %2159 = vmatprep.mubr.f32.mxu0 0.0
  %2160 = vmatmul.mubr.f32.gmra.mxu0 %v2068
  %v2161 = vpop.f32.mrf.mxu0
  %v2162 = vadd.f32 %v2058, %v2161
  %v2163 = vpop.f32.mrf.mxu0
  %2164 = vmatprep.mubr.f32.mxu0 0.0
  %2165 = vmatmul.mubr.f32.gmra.mxu0 %v2071
  %v2166 = vpop.f32.mrf.mxu0
  %v2167 = vadd.f32 %v2058, %v2166
  %v2168 = vpop.f32.mrf.mxu0
  %2169 = vmatprep.mubr.f32.mxu0 0.0
  %2170 = vmatmul.mubr.f32.gmra.mxu0 %v2074
  %v2171 = vpop.f32.mrf.mxu0
  %v2172 = vadd.f32 %v2058, %v2171
  %v2173 = vpop.f32.mrf.mxu0
  %2174 = vmatprep.mubr.f32.mxu0 0.0
  %2175 = vmatmul.mubr.f32.gmra.mxu0 %v2077
  %v2176 = vpop.f32.mrf.mxu0
  %v2177 = vadd.f32 %v2058, %v2176
  %v2178 = vpop.f32.mrf.mxu0
  %2179 = vmatprep.mubr.f32.mxu0 0.0
  %2180 = vmatmul.mubr.f32.gmra.mxu0 %v2080
  %v2181 = vpop.f32.mrf.mxu0
  %v2182 = vadd.f32 %v2058, %v2181
  %v2183 = vpop.f32.mrf.mxu0
  %2184 = vmatprep.mubr.f32.mxu0 0.0
  %2185 = vmatmul.mubr.f32.gmra.mxu0 %v2083
  %v2186 = vpop.f32.mrf.mxu0
  %v2187 = vadd.f32 %v2058, %v2186
  %v2188 = vpop.f32.mrf.mxu0
  %2189 = vdwg.mxu0
  %v2190 = vmax.f32 %v2152, 0.0
  %v2191 = vmax.f32 %v2157, 0.0
  %v2192 = vmax.f32 %v2162, 0.0
  %v2193 = vmax.f32 %v2167, 0.0
  %v2194 = vmax.f32 %v2172, 0.0
  %v2195 = vmax.f32 %v2177, 0.0
  %v2196 = vmax.f32 %v2182, 0.0
  %v2197 = vmax.f32 %v2187, 0.0
  %v2198 = vld [vmem:[%s11] sm:$0xff]
  %v2199 = vld [vmem:[%s11 + $0x8] sm:$0x3]
  %v2200 = vld [vmem:[%s12] sm:$0x1]
  %v2202 = vlaneseq
  %v2203 = vshrl.u32 %v2202, 7
  %v2204 = vsub.s32 0, %v2203
  %v2205 = vrot.slane %v2200, %v2204
  %vm2207 = vcmask 80896
  %v2209 = vsel %vm2207, %v2190, 0
  %v2212 = vsel %vm2207, %v2191, 0
  %v2215 = vsel %vm2207, %v2192, 0
  %v2218 = vsel %vm2207, %v2193, 0
  %v2221 = vsel %vm2207, %v2194, 0
  %v2224 = vsel %vm2207, %v2195, 0
  %v2227 = vsel %vm2207, %v2196, 0
  %v2230 = vsel %vm2207, %v2197, 0
  %vm2232 = vcmask 1041408
  %v2234 = vsel %vm2232, %v2199, 0
  %2236 = vmatprep.subr.mxu0 0.0
  %2237 = vmatpush1.msra.mxu0 0.0
  %2238 = vmatprep.subr.mxu0 0.0
  %2239 = vmatpush1.msra.mxu0 0.0
  %2240 = vmatprep.subr.mxu0 0.0
  %2241 = vmatpush1.msra.mxu0 0.0
  %2242 = vmatprep.subr.mxu0 0.0
  %2243 = vmatpush1.msra.mxu0 0.0
  %2244 = vmatprep.subr.mxu0 0.0
  %2245 = vmatpush1.msra.mxu0 0.0
  %2246 = vmatprep.subr.mxu0 0.0
  %2247 = vmatpush1.msra.mxu0 0.0
  %2248 = vmatprep.subr.mxu0 0.0
  %2249 = vmatpush1.msra.mxu0 0.0
  %2250 = vmatprep.subr.mxu0 0.0
  %2251 = vmatpush1.msra.mxu0 0.0
  %2252 = vmatprep.subr.mxu0 0.0
  %2253 = vmatpush1.msra.mxu0 0.0
  %2254 = vmatprep.subr.mxu0 0.0
  %2255 = vmatpush1.msra.mxu0 0.0
  %2256 = vmatprep.subr.mxu0 0.0
  %2257 = vmatpush1.msra.mxu0 0.0
  %2258 = vmatprep.subr.mxu0 0.0
  %2259 = vmatpush1.msra.mxu0 0.0
  %2260 = vmatprep.subr.mxu0 0.0
  %2261 = vmatpush1.msra.mxu0 0.0
  %2262 = vmatprep.subr.mxu0 0.0
  %2263 = vmatpush1.msra.mxu0 0.0
  %2264 = vmatprep.subr.mxu0 0.0
  %2265 = vmatpush1.msra.mxu0 %v2234
  %2266 = vmatprep.subr.mxu0 0.0
  %2267 = vmatpush1.msra.mxu0 %v2198
  %2268 = vmatprep.subr.mxu0 0.0
  %2269 = vmatpush2.msra.mxu0 0.0
  %2270 = vmatprep.subr.mxu0 0.0
  %2271 = vmatpush2.msra.mxu0 0.0
  %2272 = vmatprep.subr.mxu0 0.0
  %2273 = vmatpush2.msra.mxu0 0.0
  %2274 = vmatprep.subr.mxu0 0.0
  %2275 = vmatpush2.msra.mxu0 0.0
  %2276 = vmatprep.subr.mxu0 0.0
  %2277 = vmatpush2.msra.mxu0 0.0
  %2278 = vmatprep.subr.mxu0 0.0
  %2279 = vmatpush2.msra.mxu0 0.0
  %2280 = vmatprep.subr.mxu0 0.0
  %2281 = vmatpush2.msra.mxu0 0.0
  %2282 = vmatprep.subr.mxu0 0.0
  %2283 = vmatpush2.msra.mxu0 0.0
  %2284 = vmatprep.subr.mxu0 0.0
  %2285 = vmatpush2.msra.mxu0 0.0
  %2286 = vmatprep.subr.mxu0 0.0
  %2287 = vmatpush2.msra.mxu0 0.0
  %2288 = vmatprep.subr.mxu0 0.0
  %2289 = vmatpush2.msra.mxu0 0.0
  %2290 = vmatprep.subr.mxu0 0.0
  %2291 = vmatpush2.msra.mxu0 0.0
  %2292 = vmatprep.subr.mxu0 0.0
  %2293 = vmatpush2.msra.mxu0 0.0
  %2294 = vmatprep.subr.mxu0 0.0
  %2295 = vmatpush2.msra.mxu0 0.0
  %2296 = vmatprep.subr.mxu0 0.0
  %2297 = vmatpush2.msra.mxu0 0.0
  %2298 = vmatprep.subr.mxu0 0.0
  %2299 = vmatpush2.msra.mxu0 0.0
  %2300 = vmatprep.mubr.f32.mxu0 0.0
  %2301 = vmatmul.mubr.f32.gmra.mxu0 %v2209
  %v2302 = vpop.f32.mrf.mxu0
  %v2303 = vadd.f32 %v2205, %v2302
  %v2304 = vpop.f32.mrf.mxu0
  %2305 = vmatprep.mubr.f32.mxu0 0.0
  %2306 = vmatmul.mubr.f32.gmra.mxu0 %v2212
  %v2307 = vpop.f32.mrf.mxu0
  %v2308 = vadd.f32 %v2205, %v2307
  %v2309 = vpop.f32.mrf.mxu0
  %2310 = vmatprep.mubr.f32.mxu0 0.0
  %2311 = vmatmul.mubr.f32.gmra.mxu0 %v2215
  %v2312 = vpop.f32.mrf.mxu0
  %v2313 = vadd.f32 %v2205, %v2312
  %v2314 = vpop.f32.mrf.mxu0
  %2315 = vmatprep.mubr.f32.mxu0 0.0
  %2316 = vmatmul.mubr.f32.gmra.mxu0 %v2218
  %v2317 = vpop.f32.mrf.mxu0
  %v2318 = vadd.f32 %v2205, %v2317
  %v2319 = vpop.f32.mrf.mxu0
  %2320 = vmatprep.mubr.f32.mxu0 0.0
  %2321 = vmatmul.mubr.f32.gmra.mxu0 %v2221
  %v2322 = vpop.f32.mrf.mxu0
  %v2323 = vadd.f32 %v2205, %v2322
  %v2324 = vpop.f32.mrf.mxu0
  %2325 = vmatprep.mubr.f32.mxu0 0.0
  %2326 = vmatmul.mubr.f32.gmra.mxu0 %v2224
  %v2327 = vpop.f32.mrf.mxu0
  %v2328 = vadd.f32 %v2205, %v2327
  %v2329 = vpop.f32.mrf.mxu0
  %2330 = vmatprep.mubr.f32.mxu0 0.0
  %2331 = vmatmul.mubr.f32.gmra.mxu0 %v2227
  %v2332 = vpop.f32.mrf.mxu0
  %v2333 = vadd.f32 %v2205, %v2332
  %v2334 = vpop.f32.mrf.mxu0
  %2335 = vmatprep.mubr.f32.mxu0 0.0
  %2336 = vmatmul.mubr.f32.gmra.mxu0 %v2230
  %v2337 = vpop.f32.mrf.mxu0
  %v2338 = vadd.f32 %v2205, %v2337
  %v2339 = vpop.f32.mrf.mxu0
  %2340 = vdwg.mxu0
  %vm2341 = vcmask 31744
  %2342 = vst.msk [vmem:[%s13] sm:$0xff] %vm2341, %v2303
  %2343 = vst.msk [vmem:[%s13 + $0x8] sm:$0xff] %vm2341, %v2308
  %2344 = vst.msk [vmem:[%s13 + $0x10] sm:$0xff] %vm2341, %v2313
  %2345 = vst.msk [vmem:[%s13 + $0x18] sm:$0xff] %vm2341, %v2318
  %2346 = vst.msk [vmem:[%s13 + $0x20] sm:$0xff] %vm2341, %v2323
  %2347 = vst.msk [vmem:[%s13 + $0x28] sm:$0xff] %vm2341, %v2328
  %2348 = vst.msk [vmem:[%s13 + $0x30] sm:$0xff] %vm2341, %v2333
  %2349 = vst.msk [vmem:[%s13 + $0x38] sm:$0xff] %vm2341, %v2338
  // Predicated region
  $region54: #{tpu_custom_call.1} parent=0 // pred_check
    _
  $region55: #{tpu_custom_call.1} parent=0 // pred_check_branch
    %2351 = sbr.rel (0) target = $region57
  $region56: #{tpu_custom_call.1} parent=0 // pred_region
    _
  $region57: #{tpu_custom_call.1} parent=0 // pred_fallthru
    _
  // Predicated region
  $region58: #{tpu_custom_call.1} parent=0 // pred_check
    _
  $region59: #{tpu_custom_call.1} parent=0 // pred_check_branch
    %2353 = sbr.rel (0) target = $region61
  $region60: #{tpu_custom_call.1} parent=0 // pred_region
    _
  $region61: #{tpu_custom_call.1} parent=0 // pred_fallthru
    _

</llo_original>
